<compile_context>
chip_gen: v7x
topology: tpu7x:2x2x1
jax: 0.10.0
libtpu: 0.0.40
codegen_flags: <defaults>
</compile_context>

<pallas_src>
import jax
import jax.numpy as jnp
from jax.experimental import pallas as pl
from jax.experimental.pallas import tpu as pltpu

MARGIN = (1.0, 5.0)   # self.margin = [1, 5]
CHUNK = 512           # lane-dense tile (multiple of 128); triu tile = 512 KiB bf16


# ---------------------------------------------------------------------------
# Kernel: streaming lovasz hinge over sorted rows, carried cumsum across chunks
# ---------------------------------------------------------------------------
def lovasz_kernel(tsum_ref, negh_ref, truth_ref, loss_ref,
                  triu_ref, carry_ref, jprev_ref):
    n = pl.program_id(0)
    C = negh_ref.shape[1]

    @pl.when(n == 0)
    def _init():
        # Upper-triangular (incl. diagonal) ones tile, generated once via iota
        # compare and kept in VMEM scratch for the whole grid (no HBM constant).
        r = jax.lax.broadcasted_iota(jnp.int32, triu_ref.shape, 0)
        c = jax.lax.broadcasted_iota(jnp.int32, triu_ref.shape, 1)
        triu_ref[...] = jnp.where(r <= c, 1.0, 0.0).astype(jnp.bfloat16)
        loss_ref[...] = jnp.zeros_like(loss_ref)
        carry_ref[...] = jnp.zeros_like(carry_ref)
        jprev_ref[...] = jnp.zeros_like(jprev_ref)

    h = jnp.maximum(-negh_ref[...], 0.0)          # relu(hinge), (B, C) f32
    t = truth_ref[...]                            # sorted truth, (B, C) bf16 (0/1, exact)
    tsum = tsum_ref[...]                          # (B, 1) f32, total truth per row

    # Inclusive cumsum of truth: within-chunk part on the MXU (bf16 in, f32 acc)
    # plus the carried sum of all previous chunks.
    cs = jnp.dot(t, triu_ref[...], preferred_element_type=jnp.float32)   # (B, C)
    cs = cs + carry_ref[...]                      # global cumsum(truth)

    # Global 1-based position; cumsum(1 - t)_i == (i+1) - cumsum(t)_i for 0/1 truth.
    col = jax.lax.broadcasted_iota(jnp.int32, (t.shape[0], C), 1)
    pos1 = (col + 1 + n * C).astype(jnp.float32)

    intersection = tsum - cs
    union = tsum + (pos1 - cs)                    # >= 1, no NaN guard needed
    jacc = 1.0 - intersection / union             # (B, C)

    # gradient_i = jacc_i - jacc_{i-1}; jacc_{i-1} of the chunk's first element
    # is carried from the previous chunk (0 for the very first element overall).
    shifted = pltpu.roll(jacc, shift=1, axis=1)   # XLU, essentially free
    prev = jnp.where(col == 0, 0.0, shifted)
    loss_ref[...] += (jnp.sum(h * (jacc - prev), axis=1, keepdims=True)
                      - h[:, 0:1] * jprev_ref[...])

    # Carries for the next chunk (computed from (B,1) quantities only).
    carry_new = carry_ref[...] + jnp.sum(t.astype(jnp.float32), axis=1, keepdims=True)
    pos_last = ((n + 1) * C).astype(jnp.float32)  # 1-based index of chunk's last element
    jprev_ref[...] = 1.0 - (tsum - carry_new) / (tsum + (pos_last - carry_new))
    carry_ref[...] = carry_new


# ---------------------------------------------------------------------------
# Wrapper
# ---------------------------------------------------------------------------
@jax.jit
def lovasz_loss(logit_pixel, truth_pixel):
    B = logit_pixel.shape[0]
    logit = logit_pixel.reshape(B, -1).astype(jnp.float32)
    truth = truth_pixel.reshape(B, -1).astype(jnp.float32)
    N = logit.shape[1]

    # Elementwise hinge, folded into the (negated) ascending sort key.
    m = truth * (MARGIN[1] - MARGIN[0]) + MARGIN[0]
    sign = 2.0 * truth - 1.0
    neg_hinge = logit * sign - m                  # == -(m - logit * sign)

    tsum = jnp.sum(truth, axis=1, keepdims=True)  # permutation-invariant total

    # Pad N to a multiple of CHUNK; pads get a huge sort key so they land at the
    # end with truth=0 and relu(hinge)=0 -> zero loss contribution.
    Np = ((N + CHUNK - 1) // CHUNK) * CHUNK
    pad = Np - N
    if pad:
        big = jnp.finfo(jnp.float32).max
        neg_hinge = jnp.pad(neg_hinge, ((0, 0), (0, pad)), constant_values=big)
        truth_p = jnp.pad(truth, ((0, 0), (0, pad)))
    else:
        truth_p = truth

    # One multi-operand sort (ascending on -hinge == descending on hinge).
    negh_sorted, truth_sorted = jax.lax.sort_key_val(neg_hinge, truth_p, dimension=1)
    truth_sorted = truth_sorted.astype(jnp.bfloat16)   # exact for 0/1 values

    num_chunks = Np // CHUNK
    per_batch = pl.pallas_call(
        lovasz_kernel,
        out_shape=jax.ShapeDtypeStruct((B, 1), jnp.float32),
        grid_spec=pltpu.PrefetchScalarGridSpec(
            num_scalar_prefetch=0,
            grid=(num_chunks,),
            in_specs=[
                pl.BlockSpec((B, 1), lambda n: (0, 0)),        # tsum (resident)
                pl.BlockSpec((B, CHUNK), lambda n: (0, n)),    # -hinge, sorted
                pl.BlockSpec((B, CHUNK), lambda n: (0, n)),    # truth, sorted, bf16
            ],
            out_specs=pl.BlockSpec((B, 1), lambda n: (0, 0)),  # resident accumulator
            scratch_shapes=[
                pltpu.VMEM((CHUNK, CHUNK), jnp.bfloat16),      # triangular tile
                pltpu.VMEM((B, 1), jnp.float32),               # cumsum(truth) carry
                pltpu.VMEM((B, 1), jnp.float32),               # prev-chunk last jaccard
            ],
        ),
        compiler_params=pltpu.CompilerParams(
            dimension_semantics=("arbitrary",),                # carried reduction axis
        ),
    )(tsum, negh_sorted, truth_sorted)

    return jnp.mean(per_batch)


# ---------------------------------------------------------------------------
# Pure-JAX reference (mirrors the PyTorch code) for a sanity check.
# ---------------------------------------------------------------------------
def lovasz_loss_ref(logit_pixel, truth_pixel):
    B = logit_pixel.shape[0]
    logit = logit_pixel.reshape(B, -1).astype(jnp.float32)
    truth = truth_pixel.reshape(B, -1).astype(jnp.float32)

    def one(l, t):
        m = t * (MARGIN[1] - MARGIN[0]) + MARGIN[0]
        sign = 2.0 * t - 1.0
        hinge = m - l * sign
        perm = jnp.argsort(-hinge)
        hinge_s = jnp.maximum(hinge[perm], 0.0)
        ts = t[perm]
        t_sum = ts.sum()
        intersection = t_sum - jnp.cumsum(ts)
        union = t_sum + jnp.cumsum(1.0 - ts)
        jaccard = 1.0 - intersection / union
        grad = jaccard - jnp.concatenate([jnp.zeros((1,)), jaccard[:-1]])
        return jnp.dot(hinge_s, grad)

    return jnp.mean(jax.vmap(one)(logit, truth))


if __name__ == "__main__":
    key = jax.random.PRNGKey(0)
    k1, k2 = jax.random.split(key)

    B, C, H, W = 2, 3, 16, 16        # NCHW, N = 768 -> padded to 1024 = 2 chunks
    logit_pixel = jax.random.normal(k1, (B, C, H, W), dtype=jnp.float32)
    truth_pixel = (jax.random.uniform(k2, (B, C, H, W)) > 0.5).astype(jnp.float32)

    out = lovasz_loss(logit_pixel, truth_pixel)
    jax.block_until_ready(out)

    ref = lovasz_loss_ref(logit_pixel, truth_pixel)
    assert jnp.allclose(out, ref, rtol=1e-4, atol=1e-4), (out, ref)

    print("KERNEL_OK")
</pallas_src>

<mosaic_0001>
module attributes {stable_mosaic.version = 11 : i64} {
  func.func @lovasz_kernel(%arg0: i32, %arg1: memref<2x1xf32, #tpu.memory_space<vmem>>, %arg2: memref<2x512xf32, #tpu.memory_space<vmem>>, %arg3: memref<2x512xbf16, #tpu.memory_space<vmem>>, %arg4: memref<2x1xf32, #tpu.memory_space<vmem>>, %arg5: memref<512x512xbf16, #tpu.memory_space<vmem>>, %arg6: memref<2x1xf32, #tpu.memory_space<vmem>>, %arg7: memref<2x1xf32, #tpu.memory_space<vmem>>) attributes {dimension_semantics = [#tpu.dimension_semantics<arbitrary>], iteration_bounds = array<i64: 2>, scalar_prefetch = 0 : i64, scratch_operands = 3 : i64, tpu.core_type = #tpu.core_type<tc>, window_params = [{pipeline_mode = #tpu.pipeline_mode<synchronous>, transform_indices = @transform_0, window_bounds = array<i64: 2, 1>}, {transform_indices = @transform_1, window_bounds = array<i64: 2, 512>}, {transform_indices = @transform_2, window_bounds = array<i64: 2, 512>}, {pipeline_mode = #tpu.pipeline_mode<synchronous>, transform_indices = @transform_3, window_bounds = array<i64: 2, 1>}]} {
    %c0_i32 = arith.constant 0 : i32
    %0 = arith.cmpi eq, %arg0, %c0_i32 : i32
    %1 = arith.extui %0 : i1 to i32
    %c0_i32_0 = arith.constant 0 : i32
    %2 = arith.cmpi ne, %1, %c0_i32_0 : i32
    scf.if %2 {
      %63 = tpu.iota {dimensions = array<i32: 0>} : vector<512x512xi32>
      %64 = tpu.iota {dimensions = array<i32: 1>} : vector<512x512xi32>
      %65 = arith.cmpi sle, %63, %64 : vector<512x512xi32>
      %cst_33 = arith.constant 1.000000e+00 : f32
      %cst_34 = arith.constant 0.000000e+00 : f32
      %66 = vector.broadcast %cst_33 : f32 to vector<512x512xf32>
      %67 = vector.broadcast %cst_34 : f32 to vector<512x512xf32>
      %68 = arith.select %65, %66, %67 : vector<512x512xi1>, vector<512x512xf32>
      %69 = arith.truncf %68 : vector<512x512xf32> to vector<512x512xbf16>
      %c0_35 = arith.constant 0 : index
      %c0_36 = arith.constant 0 : index
      %70 = vector.load %arg5[%c0_35, %c0_36] : memref<512x512xbf16, #tpu.memory_space<vmem>>, vector<512x512xbf16>
      tpu.vector_store %arg5[%c0_35, %c0_36], %69 {strides = array<i32>} : memref<512x512xbf16, #tpu.memory_space<vmem>>, vector<512x512xbf16>,
      %cst_37 = arith.constant 0.000000e+00 : f32
      %71 = vector.broadcast %cst_37 : f32 to vector<2x1xf32>
      %c0_38 = arith.constant 0 : index
      %c0_39 = arith.constant 0 : index
      %72 = vector.load %arg4[%c0_38, %c0_39] : memref<2x1xf32, #tpu.memory_space<vmem>>, vector<2x1xf32>
      tpu.vector_store %arg4[%c0_38, %c0_39], %71 {strides = array<i32>} : memref<2x1xf32, #tpu.memory_space<vmem>>, vector<2x1xf32>,
      %cst_40 = arith.constant 0.000000e+00 : f32
      %73 = vector.broadcast %cst_40 : f32 to vector<2x1xf32>
      %c0_41 = arith.constant 0 : index
      %c0_42 = arith.constant 0 : index
      %74 = vector.load %arg6[%c0_41, %c0_42] : memref<2x1xf32, #tpu.memory_space<vmem>>, vector<2x1xf32>
      tpu.vector_store %arg6[%c0_41, %c0_42], %73 {strides = array<i32>} : memref<2x1xf32, #tpu.memory_space<vmem>>, vector<2x1xf32>,
      %cst_43 = arith.constant 0.000000e+00 : f32
      %75 = vector.broadcast %cst_43 : f32 to vector<2x1xf32>
      %c0_44 = arith.constant 0 : index
      %c0_45 = arith.constant 0 : index
      %76 = vector.load %arg7[%c0_44, %c0_45] : memref<2x1xf32, #tpu.memory_space<vmem>>, vector<2x1xf32>
      tpu.vector_store %arg7[%c0_44, %c0_45], %75 {strides = array<i32>} : memref<2x1xf32, #tpu.memory_space<vmem>>, vector<2x1xf32>,
    } else {
    }
    %c0 = arith.constant 0 : index
    %c0_1 = arith.constant 0 : index
    %3 = vector.load %arg2[%c0, %c0_1] : memref<2x512xf32, #tpu.memory_space<vmem>>, vector<2x512xf32>
    %cst = arith.constant 0.000000e+00 : f32
    %4 = vector.broadcast %cst : f32 to vector<2x512xf32>
    %5 = arith.subf %4, %3 : vector<2x512xf32>
    %cst_2 = arith.constant 0.000000e+00 : f32
    %6 = vector.broadcast %cst_2 : f32 to vector<2x512xf32>
    %7 = arith.maximumf %5, %6 : vector<2x512xf32>
    %c0_3 = arith.constant 0 : index
    %c0_4 = arith.constant 0 : index
    %8 = vector.load %arg3[%c0_3, %c0_4] : memref<2x512xbf16, #tpu.memory_space<vmem>>, vector<2x512xbf16>
    %c0_5 = arith.constant 0 : index
    %c0_6 = arith.constant 0 : index
    %9 = vector.load %arg1[%c0_5, %c0_6] : memref<2x1xf32, #tpu.memory_space<vmem>>, vector<2x1xf32>
    %c0_7 = arith.constant 0 : index
    %c0_8 = arith.constant 0 : index
    %10 = vector.load %arg5[%c0_7, %c0_8] : memref<512x512xbf16, #tpu.memory_space<vmem>>, vector<512x512xbf16>
    %cst_9 = arith.constant dense<0.000000e+00> : vector<2x512xf32>
    %11 = tpu.matmul %8, %10, %cst_9 {dimension_numbers = #tpu.dot_dimension_numbers<[1], [0], [0], [1], [0, 0, 1, 1], [], []>} : vector<2x512xbf16>, vector<512x512xbf16>, vector<2x512xf32> -> vector<2x512xf32>
    %c0_10 = arith.constant 0 : index
    %c0_11 = arith.constant 0 : index
    %12 = vector.load %arg6[%c0_10, %c0_11] : memref<2x1xf32, #tpu.memory_space<vmem>>, vector<2x1xf32>
    %13 = vector.broadcast %12 : vector<2x1xf32> to vector<2x512xf32>
    %14 = arith.addf %11, %13 : vector<2x512xf32>
    %15 = tpu.iota {dimensions = array<i32: 1>} : vector<2x512xi32>
    %c1_i32 = arith.constant 1 : i32
    %16 = vector.broadcast %c1_i32 : i32 to vector<2x512xi32>
    %17 = arith.addi %15, %16 : vector<2x512xi32>
    %c512_i32 = arith.constant 512 : i32
    %18 = arith.muli %arg0, %c512_i32 : i32
    %19 = vector.broadcast %18 : i32 to vector<2x512xi32>
    %20 = arith.addi %17, %19 : vector<2x512xi32>
    %21 = arith.sitofp %20 : vector<2x512xi32> to vector<2x512xf32>
    %22 = vector.broadcast %9 : vector<2x1xf32> to vector<2x512xf32>
    %23 = arith.subf %22, %14 : vector<2x512xf32>
    %24 = arith.subf %21, %14 : vector<2x512xf32>
    %25 = vector.broadcast %9 : vector<2x1xf32> to vector<2x512xf32>
    %26 = arith.addf %25, %24 : vector<2x512xf32>
    %27 = arith.divf %23, %26 : vector<2x512xf32>
    %cst_12 = arith.constant 1.000000e+00 : f32
    %28 = vector.broadcast %cst_12 : f32 to vector<2x512xf32>
    %29 = arith.subf %28, %27 : vector<2x512xf32>
    %c1_i32_13 = arith.constant 1 : i32
    %30 = tpu.dynamic_rotate %29 by %c1_i32_13 dim 1 : vector<2x512xf32>, i32 -> vector<2x512xf32>
    %c0_i32_14 = arith.constant 0 : i32
    %31 = vector.broadcast %c0_i32_14 : i32 to vector<2x512xi32>
    %32 = arith.cmpi eq, %15, %31 : vector<2x512xi32>
    %cst_15 = arith.constant 0.000000e+00 : f32
    %33 = vector.broadcast %cst_15 : f32 to vector<2x512xf32>
    %34 = arith.select %32, %33, %30 : vector<2x512xi1>, vector<2x512xf32>
    %c0_16 = arith.constant 0 : index
    %c0_17 = arith.constant 0 : index
    %35 = vector.load %arg4[%c0_16, %c0_17] : memref<2x1xf32, #tpu.memory_space<vmem>>, vector<2x1xf32>
    %36 = arith.subf %29, %34 : vector<2x512xf32>
    %37 = arith.mulf %7, %36 : vector<2x512xf32>
    %cst_18 = arith.constant dense<0.000000e+00> : vector<2xf32>
    %38 = vector.multi_reduction <add>, %37, %cst_18 [1] : vector<2x512xf32> to vector<2xf32>
    %39 = vector.shape_cast %38 : vector<2xf32> to vector<2x1xf32>
    %40 = vector.extract_strided_slice %7 {offsets = [0, 0], sizes = [2, 1], strides = [1, 1]} : vector<2x512xf32> to vector<2x1xf32>
    %c0_19 = arith.constant 0 : index
    %c0_20 = arith.constant 0 : index
    %41 = vector.load %arg7[%c0_19, %c0_20] : memref<2x1xf32, #tpu.memory_space<vmem>>, vector<2x1xf32>
    %42 = arith.mulf %40, %41 : vector<2x1xf32>
    %43 = arith.subf %39, %42 : vector<2x1xf32>
    %44 = arith.addf %35, %43 : vector<2x1xf32>
    %c0_21 = arith.constant 0 : index
    %c0_22 = arith.constant 0 : index
    %45 = vector.load %arg4[%c0_21, %c0_22] : memref<2x1xf32, #tpu.memory_space<vmem>>, vector<2x1xf32>
    tpu.vector_store %arg4[%c0_21, %c0_22], %44 {strides = array<i32>} : memref<2x1xf32, #tpu.memory_space<vmem>>, vector<2x1xf32>,
    %c0_23 = arith.constant 0 : index
    %c0_24 = arith.constant 0 : index
    %46 = vector.load %arg6[%c0_23, %c0_24] : memref<2x1xf32, #tpu.memory_space<vmem>>, vector<2x1xf32>
    %47 = arith.extf %8 : vector<2x512xbf16> to vector<2x512xf32>
    %cst_25 = arith.constant dense<0.000000e+00> : vector<2xf32>
    %48 = vector.multi_reduction <add>, %47, %cst_25 [1] : vector<2x512xf32> to vector<2xf32>
    %49 = vector.shape_cast %48 : vector<2xf32> to vector<2x1xf32>
    %50 = arith.addf %46, %49 : vector<2x1xf32>
    %c1_i32_26 = arith.constant 1 : i32
    %51 = arith.addi %arg0, %c1_i32_26 : i32
    %c512_i32_27 = arith.constant 512 : i32
    %52 = arith.muli %51, %c512_i32_27 : i32
    %53 = arith.sitofp %52 : i32 to f32
    %54 = arith.subf %9, %50 : vector<2x1xf32>
    %55 = vector.broadcast %53 : f32 to vector<2x1xf32>
    %56 = arith.subf %55, %50 : vector<2x1xf32>
    %57 = arith.addf %9, %56 : vector<2x1xf32>
    %58 = arith.divf %54, %57 : vector<2x1xf32>
    %cst_28 = arith.constant 1.000000e+00 : f32
    %59 = vector.broadcast %cst_28 : f32 to vector<2x1xf32>
    %60 = arith.subf %59, %58 : vector<2x1xf32>
    %c0_29 = arith.constant 0 : index
    %c0_30 = arith.constant 0 : index
    %61 = vector.load %arg7[%c0_29, %c0_30] : memref<2x1xf32, #tpu.memory_space<vmem>>, vector<2x1xf32>
    tpu.vector_store %arg7[%c0_29, %c0_30], %60 {strides = array<i32>} : memref<2x1xf32, #tpu.memory_space<vmem>>, vector<2x1xf32>,
    %c0_31 = arith.constant 0 : index
    %c0_32 = arith.constant 0 : index
    %62 = vector.load %arg6[%c0_31, %c0_32] : memref<2x1xf32, #tpu.memory_space<vmem>>, vector<2x1xf32>
    tpu.vector_store %arg6[%c0_31, %c0_32], %50 {strides = array<i32>} : memref<2x1xf32, #tpu.memory_space<vmem>>, vector<2x1xf32>,
    return
  }
  func.func @transform_0(%arg0: i32) -> (i32, i32) {
    %c0_i32 = arith.constant 0 : i32
    %c0_i32_0 = arith.constant 0 : i32
    %c0_i32_1 = arith.constant 0 : i32
    return %c0_i32, %c0_i32_0 : i32, i32
  }
  func.func @transform_1(%arg0: i32) -> (i32, i32) {
    %c0_i32 = arith.constant 0 : i32
    %c0_i32_0 = arith.constant 0 : i32
    return %c0_i32, %arg0 : i32, i32
  }
  func.func @transform_2(%arg0: i32) -> (i32, i32) {
    %c0_i32 = arith.constant 0 : i32
    %c0_i32_0 = arith.constant 0 : i32
    return %c0_i32, %arg0 : i32, i32
  }
  func.func @transform_3(%arg0: i32) -> (i32, i32) {
    %c0_i32 = arith.constant 0 : i32
    %c0_i32_0 = arith.constant 0 : i32
    %c0_i32_1 = arith.constant 0 : i32
    return %c0_i32, %c0_i32_0 : i32, i32
  }
}

</mosaic_0001>

<llo_original>
// kernel: lovasz_loss.1
$region0: #{lovasz_loss.1}
  #allocation0 [shape = 'u32[]', space=smem, size = 0x4, offset = 0x4, fixed_abs, tag = 'smem constant byte address 0x4 - core index']
  #allocation1 [shape = 'u32[144,128]{1,0:T(1,128)}', space=vmem, size = 0x12000, scoped, tag = 'internal scratch']
  #allocation2 [shape = 'bf16[512,512]{1,0:T(16,128)(2,1)}', space=vmem, size = 0x80000, scoped, tag = 'scratch operand']
  #allocation3 [shape = 'f32[2,1]{1,0:T(2,128)}', space=vmem, size = 0x400, scoped, tag = 'scratch operand']
  #allocation4 [shape = 'f32[2,1]{1,0:T(2,128)}', space=vmem, size = 0x400, scoped, tag = 'scratch operand']
  %s0 = inlined_call_operand.vmem [shape: f32[2,1], index: 0, kind: input, shape index: {}]
  %s1 = inlined_call_operand.vmem [shape: f32[2,1024], index: 1, kind: input, shape index: {}]
  %s2 = inlined_call_operand.vmem [shape: bf16[2,1024], index: 2, kind: input, shape index: {}]
  %s3 = inlined_call_operand.vmem [shape: f32[2,1], index: 3, kind: output, shape index: {}]
  %s4 = sld [smem:[#allocation0]]
  $region49: #{lovasz_loss.1} parent=0
    _
  %s6 = ssub.s32 1, %s4
  %s7 = scalar_select 0, %s6, %s4
  loop: start=0, step=1, limit=4
  $region2: #{lovasz_loss.1} parent=0 // loop_pre_header
    _
  $region3: #{lovasz_loss.1} parent=0 // loop_header
    %s9 = sphi 0, %s13
    %p10 = scmp.ge.s32.totalorder %s9, 4
    %s17 = sphi 0, %s17
    %s19 = sphi 0, %s17
    %s20 = sphi 0, %s19
    %s34 = sphi 0, %s20
    %s40 = sphi 0, %s42
    %s43 = sphi 0, %s40
    %s44 = sphi 0, %s43
    %s60 = sphi 0, %s44
    %s66 = sphi 0, %s68
    %s69 = sphi 0, %s66
    %s70 = sphi 0, %s69
    %s86 = sphi 0, %s70
    %s90 = sphi 0, %s90
    %s92 = sphi 0, %s90
    %s93 = sphi 0, %s92
    %s107 = sphi 0, %s93
  $region4: #{lovasz_loss.1} parent=0 // loop_header_branch
    %12 = sbr.rel (%p10) target = $region8
  $region5: #{lovasz_loss.1} parent=0 // loop_body
    %s14 = ssub.s32 %s9, 1
    %s15 = ssub.s32 %s9, 2
    %s16 = sadd.s32 %s9, 1
    %s18 = sadd.s32 %s17, 1
    %p21 = scmp.eq.s32.totalorder %s9, 1
    %p22 = scmp.ne.s32.totalorder %s17, %s19
    %p23 = scmp.eq.s32.totalorder %s9, 0
    %p24 = por %p22, %p23
    %p25 = scmp.ne.s32.totalorder %s17, %s19
    %p26 = scmp.eq.s32.totalorder %s14, 1
    %p27 = por %p25, %p26
    %p28 = scmp.ne.s32.totalorder %s19, %s20
    %p29 = scmp.eq.s32.totalorder %s14, 0
    %p30 = por %p28, %p29
    %p31 = scmp.ne.s32.totalorder %s19, %s20
    %p32 = scmp.eq.s32.totalorder %s15, 1
    %p33 = por %p31, %p32
    %p35 = scmp.ne.s32.totalorder %s20, %s34
    %p36 = scmp.eq.s32.totalorder %s15, 0
    %p37 = por %p35, %p36
    %s38 = ssub.s32 %s9, %s16
    %p39 = scmp.eq.s32.totalorder %s38, 0
    %s41 = sadd.s32 %s40, 1
    %s42 = scalar_select %p39, %s40, %s41
    %p45 = pneg %p39
    %p46 = scmp.eq.s32.totalorder %s9, 1
    %p47 = por %p45, %p46
    %p48 = scmp.ne.s32.totalorder %s40, %s43
    %p49 = scmp.eq.s32.totalorder %s9, 0
    %p50 = por %p48, %p49
    %p51 = scmp.ne.s32.totalorder %s40, %s43
    %p52 = scmp.eq.s32.totalorder %s14, 1
    %p53 = por %p51, %p52
    %p54 = scmp.ne.s32.totalorder %s43, %s44
    %p55 = scmp.eq.s32.totalorder %s14, 0
    %p56 = por %p54, %p55
    %p57 = scmp.ne.s32.totalorder %s43, %s44
    %p58 = scmp.eq.s32.totalorder %s15, 1
    %p59 = por %p57, %p58
    %p61 = scmp.ne.s32.totalorder %s44, %s60
    %p62 = scmp.eq.s32.totalorder %s15, 0
    %p63 = por %p61, %p62
    %s64 = ssub.s32 %s9, %s16
    %p65 = scmp.eq.s32.totalorder %s64, 0
    %s67 = sadd.s32 %s66, 1
    %s68 = scalar_select %p65, %s66, %s67
    %p71 = pneg %p65
    %p72 = scmp.eq.s32.totalorder %s9, 1
    %p73 = por %p71, %p72
    %p74 = scmp.ne.s32.totalorder %s66, %s69
    %p75 = scmp.eq.s32.totalorder %s9, 0
    %p76 = por %p74, %p75
    %p77 = scmp.ne.s32.totalorder %s66, %s69
    %p78 = scmp.eq.s32.totalorder %s14, 1
    %p79 = por %p77, %p78
    %p80 = scmp.ne.s32.totalorder %s69, %s70
    %p81 = scmp.eq.s32.totalorder %s14, 0
    %p82 = por %p80, %p81
    %p83 = scmp.ne.s32.totalorder %s69, %s70
    %p84 = scmp.eq.s32.totalorder %s15, 1
    %p85 = por %p83, %p84
    %p87 = scmp.ne.s32.totalorder %s70, %s86
    %p88 = scmp.eq.s32.totalorder %s15, 0
    %p89 = por %p87, %p88
    %s91 = sadd.s32 %s90, 1
    %p94 = scmp.eq.s32.totalorder %s9, 1
    %p95 = scmp.ne.s32.totalorder %s90, %s92
    %p96 = scmp.eq.s32.totalorder %s9, 0
    %p97 = por %p95, %p96
    %p98 = scmp.ne.s32.totalorder %s90, %s92
    %p99 = scmp.eq.s32.totalorder %s14, 1
    %p100 = por %p98, %p99
    %p101 = scmp.ne.s32.totalorder %s92, %s93
    %p102 = scmp.eq.s32.totalorder %s14, 0
    %p103 = por %p101, %p102
    %p104 = scmp.ne.s32.totalorder %s92, %s93
    %p105 = scmp.eq.s32.totalorder %s15, 1
    %p106 = por %p104, %p105
    %p108 = scmp.ne.s32.totalorder %s93, %s107
    %p109 = scmp.eq.s32.totalorder %s15, 0
    %p110 = por %p108, %p109
    %p111 = scmp.le.s32.totalorder 1, %s9
    %p112 = scmp.lt.s32.totalorder %s9, 3
    %p113 = pnand %p111, %p112
    %p114 = pneg %p113
    // Predicated region
    $region9: #{lovasz_loss.1} parent=5 // pred_check
      _
    $region10: #{lovasz_loss.1} parent=5 // pred_check_branch
      %116 = sbr.rel (%p113) target = $region12
    $region11: #{lovasz_loss.1} parent=5 // pred_region
      %s117 = ssub.s32 %s9, 1
      // Predicated region
      $region13: #{lovasz_loss.1} parent=11 // pred_check
        %p118 = pneg %p30
      $region14: #{lovasz_loss.1} parent=11 // pred_check_branch
        %120 = sbr.rel (%p118) target = $region16
      $region15: #{lovasz_loss.1} parent=11 // pred_region
        _
      $region16: #{lovasz_loss.1} parent=11 // pred_fallthru
        _
    $region12: #{lovasz_loss.1} parent=5 // pred_fallthru
      _
    %p121 = scmp.lt.s32.totalorder %s9, 2
    // Predicated region
    $region17: #{lovasz_loss.1} parent=5 // pred_check
      %p122 = pneg %p121
    $region18: #{lovasz_loss.1} parent=5 // pred_check_branch
      %124 = sbr.rel (%p122) target = $region20
    $region19: #{lovasz_loss.1} parent=5 // pred_region
      // Predicated region
      $region21: #{lovasz_loss.1} parent=19 // pred_check
        %p125 = pneg %p50
      $region22: #{lovasz_loss.1} parent=19 // pred_check_branch
        %127 = sbr.rel (%p125) target = $region24
      $region23: #{lovasz_loss.1} parent=19 // pred_region
        %s128 = smul.u32 4, %s9
        %p129 = scmp.lt.s32.totalorder %s128, 7
        %s130 = scalar_select %p129, %s128, 7
        %s131 = smul.addr %s130, 2
        %s132 = scalar_lea.vmem %s1, %s131
        %s133 = smul.u32 4, %s9
      $region24: #{lovasz_loss.1} parent=19 // pred_fallthru
        _
      // Predicated region
      $region25: #{lovasz_loss.1} parent=19 // pred_check
        %p134 = pneg %p76
      $region26: #{lovasz_loss.1} parent=19 // pred_check_branch
        %136 = sbr.rel (%p134) target = $region28
      $region27: #{lovasz_loss.1} parent=19 // pred_region
        %s137 = smul.u32 4, %s9
        %p138 = scmp.lt.s32.totalorder %s137, 7
        %s139 = scalar_select %p138, %s137, 7
        %s140 = scalar_lea.vmem %s2, %s139
        %s141 = smul.u32 4, %s9
      $region28: #{lovasz_loss.1} parent=19 // pred_fallthru
        _
    $region20: #{lovasz_loss.1} parent=5 // pred_fallthru
      _
    %p142 = scmp.le.s32.totalorder 1, %s9
    %p143 = scmp.lt.s32.totalorder %s9, 3
    %p144 = pnand %p142, %p143
    %p145 = pneg %p144
    // Predicated region
    $region29: #{lovasz_loss.1} parent=5 // pred_check
      _
    $region30: #{lovasz_loss.1} parent=5 // pred_check_branch
      %147 = sbr.rel (%p144) target = $region32
    $region31: #{lovasz_loss.1} parent=5 // pred_region
      %s148 = ssub.s32 %s9, 1
      %p149 = pneg %p30
      %p150 = pneg %p27
      %s151 = smul.u32 4, %s14
      %p152 = scmp.lt.s32.totalorder %s151, 7
      %s153 = scalar_select %p152, %s151, 7
      %s154 = smul.addr %s153, 2
      %s155 = scalar_lea.vmem %s1, %s154
      %p156 = pneg %p56
      %p157 = pneg %p53
      %s158 = smul.u32 4, %s14
      %p159 = scmp.lt.s32.totalorder %s158, 7
      %s160 = scalar_select %p159, %s158, 7
      %s161 = scalar_lea.vmem %s2, %s160
      %p162 = pneg %p82
      %p163 = pneg %p79
      %p164 = pneg %p103
      %p165 = pneg %p100
      %s166 = smul.u32 4, %s14
      %p167 = scmp.lt.s32.totalorder %s166, 7
      %s168 = scalar_select %p167, %s166, 7
      %s169 = smul.addr %s168, 2
      %s170 = scalar_lea.vmem %s1, %s169
      %s171 = smul.u32 4, %s14
      %s172 = smul.u32 4, %s14
      %p173 = scmp.lt.s32.totalorder %s172, 7
      %s174 = scalar_select %p173, %s172, 7
      %s175 = scalar_lea.vmem %s2, %s174
      %s176 = smul.u32 4, %s14
      %p177 = scmp.eq.s32.totalorder %s14, 0
      // Predicated region
      $region33: #{lovasz_loss.1} parent=31 // pred_check
        %p178 = pneg %p177
      $region34: #{lovasz_loss.1} parent=31 // pred_check_branch
        %180 = sbr.rel (%p178) target = $region36
      $region35: #{lovasz_loss.1} parent=31 // pred_region
        %v181 = vlaneseq
        %v182 = vshrl.u32 %v181, 7
        %v183 = vadd.s32 %v182, 8
        %v184 = vadd.s32 %v182, 16
        %v185 = vadd.s32 %v182, 24
        %v186 = vadd.s32 %v182, 32
        %v187 = vadd.s32 %v182, 40
        %v188 = vadd.s32 %v182, 48
        %v189 = vadd.s32 %v182, 56
        %v190 = vadd.s32 %v182, 64
        %v191 = vadd.s32 %v182, 72
        %v192 = vadd.s32 %v182, 80
        %v193 = vadd.s32 %v182, 88
        %v194 = vadd.s32 %v182, 96
        %v195 = vadd.s32 %v182, 104
        %v196 = vadd.s32 %v182, 112
        %v197 = vadd.s32 %v182, 120
        %v198 = vadd.s32 %v182, 128
        %v199 = vadd.s32 %v182, 136
        %v200 = vadd.s32 %v182, 144
        %v201 = vadd.s32 %v182, 152
        %v202 = vadd.s32 %v182, 160
        %v203 = vadd.s32 %v182, 168
        %v204 = vadd.s32 %v182, 176
        %v205 = vadd.s32 %v182, 184
        %v206 = vadd.s32 %v182, 192
        %v207 = vadd.s32 %v182, 200
        %v208 = vadd.s32 %v182, 208
        %v209 = vadd.s32 %v182, 216
        %v210 = vadd.s32 %v182, 224
        %v211 = vadd.s32 %v182, 232
        %v212 = vadd.s32 %v182, 240
        %v213 = vadd.s32 %v182, 248
        %v214 = vadd.s32 %v182, 256
        %v215 = vadd.s32 %v182, 264
        %v216 = vadd.s32 %v182, 272
        %v217 = vadd.s32 %v182, 280
        %v218 = vadd.s32 %v182, 288
        %v219 = vadd.s32 %v182, 296
        %v220 = vadd.s32 %v182, 304
        %v221 = vadd.s32 %v182, 312
        %v222 = vadd.s32 %v182, 320
        %v223 = vadd.s32 %v182, 328
        %v224 = vadd.s32 %v182, 336
        %v225 = vadd.s32 %v182, 344
        %v226 = vadd.s32 %v182, 352
        %v227 = vadd.s32 %v182, 360
        %v228 = vadd.s32 %v182, 368
        %v229 = vadd.s32 %v182, 376
        %v230 = vadd.s32 %v182, 384
        %v231 = vadd.s32 %v182, 392
        %v232 = vadd.s32 %v182, 400
        %v233 = vadd.s32 %v182, 408
        %v234 = vadd.s32 %v182, 416
        %v235 = vadd.s32 %v182, 424
        %v236 = vadd.s32 %v182, 432
        %v237 = vadd.s32 %v182, 440
        %v238 = vadd.s32 %v182, 448
        %v239 = vadd.s32 %v182, 456
        %v240 = vadd.s32 %v182, 464
        %v241 = vadd.s32 %v182, 472
        %v242 = vadd.s32 %v182, 480
        %v243 = vadd.s32 %v182, 488
        %v244 = vadd.s32 %v182, 496
        %v245 = vadd.s32 %v182, 504
        %v246 = vlaneseq
        %v247 = vand.u32 %v246, 127
        %v248 = vadd.s32 %v247, 128
        %v249 = vadd.s32 %v247, 256
        %v250 = vadd.s32 %v247, 384
        %vm251 = vcmp.le.s32.totalorder %v182, %v247
        %vm252 = vcmp.le.s32.totalorder %v182, %v248
        %vm253 = vcmp.le.s32.totalorder %v182, %v249
        %vm254 = vcmp.le.s32.totalorder %v182, %v250
        %vm255 = vcmp.le.s32.totalorder %v183, %v247
        %vm256 = vcmp.le.s32.totalorder %v183, %v248
        %vm257 = vcmp.le.s32.totalorder %v183, %v249
        %vm258 = vcmp.le.s32.totalorder %v183, %v250
        %vm259 = vcmp.le.s32.totalorder %v184, %v247
        %vm260 = vcmp.le.s32.totalorder %v184, %v248
        %vm261 = vcmp.le.s32.totalorder %v184, %v249
        %vm262 = vcmp.le.s32.totalorder %v184, %v250
        %vm263 = vcmp.le.s32.totalorder %v185, %v247
        %vm264 = vcmp.le.s32.totalorder %v185, %v248
        %vm265 = vcmp.le.s32.totalorder %v185, %v249
        %vm266 = vcmp.le.s32.totalorder %v185, %v250
        %vm267 = vcmp.le.s32.totalorder %v186, %v247
        %vm268 = vcmp.le.s32.totalorder %v186, %v248
        %vm269 = vcmp.le.s32.totalorder %v186, %v249
        %vm270 = vcmp.le.s32.totalorder %v186, %v250
        %vm271 = vcmp.le.s32.totalorder %v187, %v247
        %vm272 = vcmp.le.s32.totalorder %v187, %v248
        %vm273 = vcmp.le.s32.totalorder %v187, %v249
        %vm274 = vcmp.le.s32.totalorder %v187, %v250
        %vm275 = vcmp.le.s32.totalorder %v188, %v247
        %vm276 = vcmp.le.s32.totalorder %v188, %v248
        %vm277 = vcmp.le.s32.totalorder %v188, %v249
        %vm278 = vcmp.le.s32.totalorder %v188, %v250
        %vm279 = vcmp.le.s32.totalorder %v189, %v247
        %vm280 = vcmp.le.s32.totalorder %v189, %v248
        %vm281 = vcmp.le.s32.totalorder %v189, %v249
        %vm282 = vcmp.le.s32.totalorder %v189, %v250
        %vm283 = vcmp.le.s32.totalorder %v190, %v247
        %vm284 = vcmp.le.s32.totalorder %v190, %v248
        %vm285 = vcmp.le.s32.totalorder %v190, %v249
        %vm286 = vcmp.le.s32.totalorder %v190, %v250
        %vm287 = vcmp.le.s32.totalorder %v191, %v247
        %vm288 = vcmp.le.s32.totalorder %v191, %v248
        %vm289 = vcmp.le.s32.totalorder %v191, %v249
        %vm290 = vcmp.le.s32.totalorder %v191, %v250
        %vm291 = vcmp.le.s32.totalorder %v192, %v247
        %vm292 = vcmp.le.s32.totalorder %v192, %v248
        %vm293 = vcmp.le.s32.totalorder %v192, %v249
        %vm294 = vcmp.le.s32.totalorder %v192, %v250
        %vm295 = vcmp.le.s32.totalorder %v193, %v247
        %vm296 = vcmp.le.s32.totalorder %v193, %v248
        %vm297 = vcmp.le.s32.totalorder %v193, %v249
        %vm298 = vcmp.le.s32.totalorder %v193, %v250
        %vm299 = vcmp.le.s32.totalorder %v194, %v247
        %vm300 = vcmp.le.s32.totalorder %v194, %v248
        %vm301 = vcmp.le.s32.totalorder %v194, %v249
        %vm302 = vcmp.le.s32.totalorder %v194, %v250
        %vm303 = vcmp.le.s32.totalorder %v195, %v247
        %vm304 = vcmp.le.s32.totalorder %v195, %v248
        %vm305 = vcmp.le.s32.totalorder %v195, %v249
        %vm306 = vcmp.le.s32.totalorder %v195, %v250
        %vm307 = vcmp.le.s32.totalorder %v196, %v247
        %vm308 = vcmp.le.s32.totalorder %v196, %v248
        %vm309 = vcmp.le.s32.totalorder %v196, %v249
        %vm310 = vcmp.le.s32.totalorder %v196, %v250
        %vm311 = vcmp.le.s32.totalorder %v197, %v247
        %vm312 = vcmp.le.s32.totalorder %v197, %v248
        %vm313 = vcmp.le.s32.totalorder %v197, %v249
        %vm314 = vcmp.le.s32.totalorder %v197, %v250
        %vm315 = vcmp.le.s32.totalorder %v198, %v247
        %vm316 = vcmp.le.s32.totalorder %v198, %v248
        %vm317 = vcmp.le.s32.totalorder %v198, %v249
        %vm318 = vcmp.le.s32.totalorder %v198, %v250
        %vm319 = vcmp.le.s32.totalorder %v199, %v247
        %vm320 = vcmp.le.s32.totalorder %v199, %v248
        %vm321 = vcmp.le.s32.totalorder %v199, %v249
        %vm322 = vcmp.le.s32.totalorder %v199, %v250
        %vm323 = vcmp.le.s32.totalorder %v200, %v247
        %vm324 = vcmp.le.s32.totalorder %v200, %v248
        %vm325 = vcmp.le.s32.totalorder %v200, %v249
        %vm326 = vcmp.le.s32.totalorder %v200, %v250
        %vm327 = vcmp.le.s32.totalorder %v201, %v247
        %vm328 = vcmp.le.s32.totalorder %v201, %v248
        %vm329 = vcmp.le.s32.totalorder %v201, %v249
        %vm330 = vcmp.le.s32.totalorder %v201, %v250
        %vm331 = vcmp.le.s32.totalorder %v202, %v247
        %vm332 = vcmp.le.s32.totalorder %v202, %v248
        %vm333 = vcmp.le.s32.totalorder %v202, %v249
        %vm334 = vcmp.le.s32.totalorder %v202, %v250
        %vm335 = vcmp.le.s32.totalorder %v203, %v247
        %vm336 = vcmp.le.s32.totalorder %v203, %v248
        %vm337 = vcmp.le.s32.totalorder %v203, %v249
        %vm338 = vcmp.le.s32.totalorder %v203, %v250
        %vm339 = vcmp.le.s32.totalorder %v204, %v247
        %vm340 = vcmp.le.s32.totalorder %v204, %v248
        %vm341 = vcmp.le.s32.totalorder %v204, %v249
        %vm342 = vcmp.le.s32.totalorder %v204, %v250
        %vm343 = vcmp.le.s32.totalorder %v205, %v247
        %vm344 = vcmp.le.s32.totalorder %v205, %v248
        %vm345 = vcmp.le.s32.totalorder %v205, %v249
        %vm346 = vcmp.le.s32.totalorder %v205, %v250
        %vm347 = vcmp.le.s32.totalorder %v206, %v247
        %vm348 = vcmp.le.s32.totalorder %v206, %v248
        %vm349 = vcmp.le.s32.totalorder %v206, %v249
        %vm350 = vcmp.le.s32.totalorder %v206, %v250
        %vm351 = vcmp.le.s32.totalorder %v207, %v247
        %vm352 = vcmp.le.s32.totalorder %v207, %v248
        %vm353 = vcmp.le.s32.totalorder %v207, %v249
        %vm354 = vcmp.le.s32.totalorder %v207, %v250
        %vm355 = vcmp.le.s32.totalorder %v208, %v247
        %vm356 = vcmp.le.s32.totalorder %v208, %v248
        %vm357 = vcmp.le.s32.totalorder %v208, %v249
        %vm358 = vcmp.le.s32.totalorder %v208, %v250
        %vm359 = vcmp.le.s32.totalorder %v209, %v247
        %vm360 = vcmp.le.s32.totalorder %v209, %v248
        %vm361 = vcmp.le.s32.totalorder %v209, %v249
        %vm362 = vcmp.le.s32.totalorder %v209, %v250
        %vm363 = vcmp.le.s32.totalorder %v210, %v247
        %vm364 = vcmp.le.s32.totalorder %v210, %v248
        %vm365 = vcmp.le.s32.totalorder %v210, %v249
        %vm366 = vcmp.le.s32.totalorder %v210, %v250
        %vm367 = vcmp.le.s32.totalorder %v211, %v247
        %vm368 = vcmp.le.s32.totalorder %v211, %v248
        %vm369 = vcmp.le.s32.totalorder %v211, %v249
        %vm370 = vcmp.le.s32.totalorder %v211, %v250
        %vm371 = vcmp.le.s32.totalorder %v212, %v247
        %vm372 = vcmp.le.s32.totalorder %v212, %v248
        %vm373 = vcmp.le.s32.totalorder %v212, %v249
        %vm374 = vcmp.le.s32.totalorder %v212, %v250
        %vm375 = vcmp.le.s32.totalorder %v213, %v247
        %vm376 = vcmp.le.s32.totalorder %v213, %v248
        %vm377 = vcmp.le.s32.totalorder %v213, %v249
        %vm378 = vcmp.le.s32.totalorder %v213, %v250
        %vm379 = vcmp.le.s32.totalorder %v214, %v247
        %vm380 = vcmp.le.s32.totalorder %v214, %v248
        %vm381 = vcmp.le.s32.totalorder %v214, %v249
        %vm382 = vcmp.le.s32.totalorder %v214, %v250
        %vm383 = vcmp.le.s32.totalorder %v215, %v247
        %vm384 = vcmp.le.s32.totalorder %v215, %v248
        %vm385 = vcmp.le.s32.totalorder %v215, %v249
        %vm386 = vcmp.le.s32.totalorder %v215, %v250
        %vm387 = vcmp.le.s32.totalorder %v216, %v247
        %vm388 = vcmp.le.s32.totalorder %v216, %v248
        %vm389 = vcmp.le.s32.totalorder %v216, %v249
        %vm390 = vcmp.le.s32.totalorder %v216, %v250
        %vm391 = vcmp.le.s32.totalorder %v217, %v247
        %vm392 = vcmp.le.s32.totalorder %v217, %v248
        %vm393 = vcmp.le.s32.totalorder %v217, %v249
        %vm394 = vcmp.le.s32.totalorder %v217, %v250
        %vm395 = vcmp.le.s32.totalorder %v218, %v247
        %vm396 = vcmp.le.s32.totalorder %v218, %v248
        %vm397 = vcmp.le.s32.totalorder %v218, %v249
        %vm398 = vcmp.le.s32.totalorder %v218, %v250
        %vm399 = vcmp.le.s32.totalorder %v219, %v247
        %vm400 = vcmp.le.s32.totalorder %v219, %v248
        %vm401 = vcmp.le.s32.totalorder %v219, %v249
        %vm402 = vcmp.le.s32.totalorder %v219, %v250
        %vm403 = vcmp.le.s32.totalorder %v220, %v247
        %vm404 = vcmp.le.s32.totalorder %v220, %v248
        %vm405 = vcmp.le.s32.totalorder %v220, %v249
        %vm406 = vcmp.le.s32.totalorder %v220, %v250
        %vm407 = vcmp.le.s32.totalorder %v221, %v247
        %vm408 = vcmp.le.s32.totalorder %v221, %v248
        %vm409 = vcmp.le.s32.totalorder %v221, %v249
        %vm410 = vcmp.le.s32.totalorder %v221, %v250
        %vm411 = vcmp.le.s32.totalorder %v222, %v247
        %vm412 = vcmp.le.s32.totalorder %v222, %v248
        %vm413 = vcmp.le.s32.totalorder %v222, %v249
        %vm414 = vcmp.le.s32.totalorder %v222, %v250
        %vm415 = vcmp.le.s32.totalorder %v223, %v247
        %vm416 = vcmp.le.s32.totalorder %v223, %v248
        %vm417 = vcmp.le.s32.totalorder %v223, %v249
        %vm418 = vcmp.le.s32.totalorder %v223, %v250
        %vm419 = vcmp.le.s32.totalorder %v224, %v247
        %vm420 = vcmp.le.s32.totalorder %v224, %v248
        %vm421 = vcmp.le.s32.totalorder %v224, %v249
        %vm422 = vcmp.le.s32.totalorder %v224, %v250
        %vm423 = vcmp.le.s32.totalorder %v225, %v247
        %vm424 = vcmp.le.s32.totalorder %v225, %v248
        %vm425 = vcmp.le.s32.totalorder %v225, %v249
        %vm426 = vcmp.le.s32.totalorder %v225, %v250
        %vm427 = vcmp.le.s32.totalorder %v226, %v247
        %vm428 = vcmp.le.s32.totalorder %v226, %v248
        %vm429 = vcmp.le.s32.totalorder %v226, %v249
        %vm430 = vcmp.le.s32.totalorder %v226, %v250
        %vm431 = vcmp.le.s32.totalorder %v227, %v247
        %vm432 = vcmp.le.s32.totalorder %v227, %v248
        %vm433 = vcmp.le.s32.totalorder %v227, %v249
        %vm434 = vcmp.le.s32.totalorder %v227, %v250
        %vm435 = vcmp.le.s32.totalorder %v228, %v247
        %vm436 = vcmp.le.s32.totalorder %v228, %v248
        %vm437 = vcmp.le.s32.totalorder %v228, %v249
        %vm438 = vcmp.le.s32.totalorder %v228, %v250
        %vm439 = vcmp.le.s32.totalorder %v229, %v247
        %vm440 = vcmp.le.s32.totalorder %v229, %v248
        %vm441 = vcmp.le.s32.totalorder %v229, %v249
        %vm442 = vcmp.le.s32.totalorder %v229, %v250
        %vm443 = vcmp.le.s32.totalorder %v230, %v247
        %vm444 = vcmp.le.s32.totalorder %v230, %v248
        %vm445 = vcmp.le.s32.totalorder %v230, %v249
        %vm446 = vcmp.le.s32.totalorder %v230, %v250
        %vm447 = vcmp.le.s32.totalorder %v231, %v247
        %vm448 = vcmp.le.s32.totalorder %v231, %v248
        %vm449 = vcmp.le.s32.totalorder %v231, %v249
        %vm450 = vcmp.le.s32.totalorder %v231, %v250
        %vm451 = vcmp.le.s32.totalorder %v232, %v247
        %vm452 = vcmp.le.s32.totalorder %v232, %v248
        %vm453 = vcmp.le.s32.totalorder %v232, %v249
        %vm454 = vcmp.le.s32.totalorder %v232, %v250
        %vm455 = vcmp.le.s32.totalorder %v233, %v247
        %vm456 = vcmp.le.s32.totalorder %v233, %v248
        %vm457 = vcmp.le.s32.totalorder %v233, %v249
        %vm458 = vcmp.le.s32.totalorder %v233, %v250
        %vm459 = vcmp.le.s32.totalorder %v234, %v247
        %vm460 = vcmp.le.s32.totalorder %v234, %v248
        %vm461 = vcmp.le.s32.totalorder %v234, %v249
        %vm462 = vcmp.le.s32.totalorder %v234, %v250
        %vm463 = vcmp.le.s32.totalorder %v235, %v247
        %vm464 = vcmp.le.s32.totalorder %v235, %v248
        %vm465 = vcmp.le.s32.totalorder %v235, %v249
        %vm466 = vcmp.le.s32.totalorder %v235, %v250
        %vm467 = vcmp.le.s32.totalorder %v236, %v247
        %vm468 = vcmp.le.s32.totalorder %v236, %v248
        %vm469 = vcmp.le.s32.totalorder %v236, %v249
        %vm470 = vcmp.le.s32.totalorder %v236, %v250
        %vm471 = vcmp.le.s32.totalorder %v237, %v247
        %vm472 = vcmp.le.s32.totalorder %v237, %v248
        %vm473 = vcmp.le.s32.totalorder %v237, %v249
        %vm474 = vcmp.le.s32.totalorder %v237, %v250
        %vm475 = vcmp.le.s32.totalorder %v238, %v247
        %vm476 = vcmp.le.s32.totalorder %v238, %v248
        %vm477 = vcmp.le.s32.totalorder %v238, %v249
        %vm478 = vcmp.le.s32.totalorder %v238, %v250
        %vm479 = vcmp.le.s32.totalorder %v239, %v247
        %vm480 = vcmp.le.s32.totalorder %v239, %v248
        %vm481 = vcmp.le.s32.totalorder %v239, %v249
        %vm482 = vcmp.le.s32.totalorder %v239, %v250
        %vm483 = vcmp.le.s32.totalorder %v240, %v247
        %vm484 = vcmp.le.s32.totalorder %v240, %v248
        %vm485 = vcmp.le.s32.totalorder %v240, %v249
        %vm486 = vcmp.le.s32.totalorder %v240, %v250
        %vm487 = vcmp.le.s32.totalorder %v241, %v247
        %vm488 = vcmp.le.s32.totalorder %v241, %v248
        %vm489 = vcmp.le.s32.totalorder %v241, %v249
        %vm490 = vcmp.le.s32.totalorder %v241, %v250
        %vm491 = vcmp.le.s32.totalorder %v242, %v247
        %vm492 = vcmp.le.s32.totalorder %v242, %v248
        %vm493 = vcmp.le.s32.totalorder %v242, %v249
        %vm494 = vcmp.le.s32.totalorder %v242, %v250
        %vm495 = vcmp.le.s32.totalorder %v243, %v247
        %vm496 = vcmp.le.s32.totalorder %v243, %v248
        %vm497 = vcmp.le.s32.totalorder %v243, %v249
        %vm498 = vcmp.le.s32.totalorder %v243, %v250
        %vm499 = vcmp.le.s32.totalorder %v244, %v247
        %vm500 = vcmp.le.s32.totalorder %v244, %v248
        %vm501 = vcmp.le.s32.totalorder %v244, %v249
        %vm502 = vcmp.le.s32.totalorder %v244, %v250
        %vm503 = vcmp.le.s32.totalorder %v245, %v247
        %vm504 = vcmp.le.s32.totalorder %v245, %v248
        %vm505 = vcmp.le.s32.totalorder %v245, %v249
        %vm506 = vcmp.le.s32.totalorder %v245, %v250
        %v507 = vsel %vm251, 1.0, 0.0
        %v508 = vsel %vm252, 1.0, 0.0
        %v509 = vsel %vm253, 1.0, 0.0
        %v510 = vsel %vm254, 1.0, 0.0
        %v511 = vsel %vm255, 1.0, 0.0
        %v512 = vsel %vm256, 1.0, 0.0
        %v513 = vsel %vm257, 1.0, 0.0
        %v514 = vsel %vm258, 1.0, 0.0
        %v515 = vsel %vm259, 1.0, 0.0
        %v516 = vsel %vm260, 1.0, 0.0
        %v517 = vsel %vm261, 1.0, 0.0
        %v518 = vsel %vm262, 1.0, 0.0
        %v519 = vsel %vm263, 1.0, 0.0
        %v520 = vsel %vm264, 1.0, 0.0
        %v521 = vsel %vm265, 1.0, 0.0
        %v522 = vsel %vm266, 1.0, 0.0
        %v523 = vsel %vm267, 1.0, 0.0
        %v524 = vsel %vm268, 1.0, 0.0
        %v525 = vsel %vm269, 1.0, 0.0
        %v526 = vsel %vm270, 1.0, 0.0
        %v527 = vsel %vm271, 1.0, 0.0
        %v528 = vsel %vm272, 1.0, 0.0
        %v529 = vsel %vm273, 1.0, 0.0
        %v530 = vsel %vm274, 1.0, 0.0
        %v531 = vsel %vm275, 1.0, 0.0
        %v532 = vsel %vm276, 1.0, 0.0
        %v533 = vsel %vm277, 1.0, 0.0
        %v534 = vsel %vm278, 1.0, 0.0
        %v535 = vsel %vm279, 1.0, 0.0
        %v536 = vsel %vm280, 1.0, 0.0
        %v537 = vsel %vm281, 1.0, 0.0
        %v538 = vsel %vm282, 1.0, 0.0
        %v539 = vsel %vm283, 1.0, 0.0
        %v540 = vsel %vm284, 1.0, 0.0
        %v541 = vsel %vm285, 1.0, 0.0
        %v542 = vsel %vm286, 1.0, 0.0
        %v543 = vsel %vm287, 1.0, 0.0
        %v544 = vsel %vm288, 1.0, 0.0
        %v545 = vsel %vm289, 1.0, 0.0
        %v546 = vsel %vm290, 1.0, 0.0
        %v547 = vsel %vm291, 1.0, 0.0
        %v548 = vsel %vm292, 1.0, 0.0
        %v549 = vsel %vm293, 1.0, 0.0
        %v550 = vsel %vm294, 1.0, 0.0
        %v551 = vsel %vm295, 1.0, 0.0
        %v552 = vsel %vm296, 1.0, 0.0
        %v553 = vsel %vm297, 1.0, 0.0
        %v554 = vsel %vm298, 1.0, 0.0
        %v555 = vsel %vm299, 1.0, 0.0
        %v556 = vsel %vm300, 1.0, 0.0
        %v557 = vsel %vm301, 1.0, 0.0
        %v558 = vsel %vm302, 1.0, 0.0
        %v559 = vsel %vm303, 1.0, 0.0
        %v560 = vsel %vm304, 1.0, 0.0
        %v561 = vsel %vm305, 1.0, 0.0
        %v562 = vsel %vm306, 1.0, 0.0
        %v563 = vsel %vm307, 1.0, 0.0
        %v564 = vsel %vm308, 1.0, 0.0
        %v565 = vsel %vm309, 1.0, 0.0
        %v566 = vsel %vm310, 1.0, 0.0
        %v567 = vsel %vm311, 1.0, 0.0
        %v568 = vsel %vm312, 1.0, 0.0
        %v569 = vsel %vm313, 1.0, 0.0
        %v570 = vsel %vm314, 1.0, 0.0
        %v571 = vsel %vm315, 1.0, 0.0
        %v572 = vsel %vm316, 1.0, 0.0
        %v573 = vsel %vm317, 1.0, 0.0
        %v574 = vsel %vm318, 1.0, 0.0
        %v575 = vsel %vm319, 1.0, 0.0
        %v576 = vsel %vm320, 1.0, 0.0
        %v577 = vsel %vm321, 1.0, 0.0
        %v578 = vsel %vm322, 1.0, 0.0
        %v579 = vsel %vm323, 1.0, 0.0
        %v580 = vsel %vm324, 1.0, 0.0
        %v581 = vsel %vm325, 1.0, 0.0
        %v582 = vsel %vm326, 1.0, 0.0
        %v583 = vsel %vm327, 1.0, 0.0
        %v584 = vsel %vm328, 1.0, 0.0
        %v585 = vsel %vm329, 1.0, 0.0
        %v586 = vsel %vm330, 1.0, 0.0
        %v587 = vsel %vm331, 1.0, 0.0
        %v588 = vsel %vm332, 1.0, 0.0
        %v589 = vsel %vm333, 1.0, 0.0
        %v590 = vsel %vm334, 1.0, 0.0
        %v591 = vsel %vm335, 1.0, 0.0
        %v592 = vsel %vm336, 1.0, 0.0
        %v593 = vsel %vm337, 1.0, 0.0
        %v594 = vsel %vm338, 1.0, 0.0
        %v595 = vsel %vm339, 1.0, 0.0
        %v596 = vsel %vm340, 1.0, 0.0
        %v597 = vsel %vm341, 1.0, 0.0
        %v598 = vsel %vm342, 1.0, 0.0
        %v599 = vsel %vm343, 1.0, 0.0
        %v600 = vsel %vm344, 1.0, 0.0
        %v601 = vsel %vm345, 1.0, 0.0
        %v602 = vsel %vm346, 1.0, 0.0
        %v603 = vsel %vm347, 1.0, 0.0
        %v604 = vsel %vm348, 1.0, 0.0
        %v605 = vsel %vm349, 1.0, 0.0
        %v606 = vsel %vm350, 1.0, 0.0
        %v607 = vsel %vm351, 1.0, 0.0
        %v608 = vsel %vm352, 1.0, 0.0
        %v609 = vsel %vm353, 1.0, 0.0
        %v610 = vsel %vm354, 1.0, 0.0
        %v611 = vsel %vm355, 1.0, 0.0
        %v612 = vsel %vm356, 1.0, 0.0
        %v613 = vsel %vm357, 1.0, 0.0
        %v614 = vsel %vm358, 1.0, 0.0
        %v615 = vsel %vm359, 1.0, 0.0
        %v616 = vsel %vm360, 1.0, 0.0
        %v617 = vsel %vm361, 1.0, 0.0
        %v618 = vsel %vm362, 1.0, 0.0
        %v619 = vsel %vm363, 1.0, 0.0
        %v620 = vsel %vm364, 1.0, 0.0
        %v621 = vsel %vm365, 1.0, 0.0
        %v622 = vsel %vm366, 1.0, 0.0
        %v623 = vsel %vm367, 1.0, 0.0
        %v624 = vsel %vm368, 1.0, 0.0
        %v625 = vsel %vm369, 1.0, 0.0
        %v626 = vsel %vm370, 1.0, 0.0
        %v627 = vsel %vm371, 1.0, 0.0
        %v628 = vsel %vm372, 1.0, 0.0
        %v629 = vsel %vm373, 1.0, 0.0
        %v630 = vsel %vm374, 1.0, 0.0
        %v631 = vsel %vm375, 1.0, 0.0
        %v632 = vsel %vm376, 1.0, 0.0
        %v633 = vsel %vm377, 1.0, 0.0
        %v634 = vsel %vm378, 1.0, 0.0
        %v635 = vsel %vm379, 1.0, 0.0
        %v636 = vsel %vm380, 1.0, 0.0
        %v637 = vsel %vm381, 1.0, 0.0
        %v638 = vsel %vm382, 1.0, 0.0
        %v639 = vsel %vm383, 1.0, 0.0
        %v640 = vsel %vm384, 1.0, 0.0
        %v641 = vsel %vm385, 1.0, 0.0
        %v642 = vsel %vm386, 1.0, 0.0
        %v643 = vsel %vm387, 1.0, 0.0
        %v644 = vsel %vm388, 1.0, 0.0
        %v645 = vsel %vm389, 1.0, 0.0
        %v646 = vsel %vm390, 1.0, 0.0
        %v647 = vsel %vm391, 1.0, 0.0
        %v648 = vsel %vm392, 1.0, 0.0
        %v649 = vsel %vm393, 1.0, 0.0
        %v650 = vsel %vm394, 1.0, 0.0
        %v651 = vsel %vm395, 1.0, 0.0
        %v652 = vsel %vm396, 1.0, 0.0
        %v653 = vsel %vm397, 1.0, 0.0
        %v654 = vsel %vm398, 1.0, 0.0
        %v655 = vsel %vm399, 1.0, 0.0
        %v656 = vsel %vm400, 1.0, 0.0
        %v657 = vsel %vm401, 1.0, 0.0
        %v658 = vsel %vm402, 1.0, 0.0
        %v659 = vsel %vm403, 1.0, 0.0
        %v660 = vsel %vm404, 1.0, 0.0
        %v661 = vsel %vm405, 1.0, 0.0
        %v662 = vsel %vm406, 1.0, 0.0
        %v663 = vsel %vm407, 1.0, 0.0
        %v664 = vsel %vm408, 1.0, 0.0
        %v665 = vsel %vm409, 1.0, 0.0
        %v666 = vsel %vm410, 1.0, 0.0
        %v667 = vsel %vm411, 1.0, 0.0
        %v668 = vsel %vm412, 1.0, 0.0
        %v669 = vsel %vm413, 1.0, 0.0
        %v670 = vsel %vm414, 1.0, 0.0
        %v671 = vsel %vm415, 1.0, 0.0
        %v672 = vsel %vm416, 1.0, 0.0
        %v673 = vsel %vm417, 1.0, 0.0
        %v674 = vsel %vm418, 1.0, 0.0
        %v675 = vsel %vm419, 1.0, 0.0
        %v676 = vsel %vm420, 1.0, 0.0
        %v677 = vsel %vm421, 1.0, 0.0
        %v678 = vsel %vm422, 1.0, 0.0
        %v679 = vsel %vm423, 1.0, 0.0
        %v680 = vsel %vm424, 1.0, 0.0
        %v681 = vsel %vm425, 1.0, 0.0
        %v682 = vsel %vm426, 1.0, 0.0
        %v683 = vsel %vm427, 1.0, 0.0
        %v684 = vsel %vm428, 1.0, 0.0
        %v685 = vsel %vm429, 1.0, 0.0
        %v686 = vsel %vm430, 1.0, 0.0
        %v687 = vsel %vm431, 1.0, 0.0
        %v688 = vsel %vm432, 1.0, 0.0
        %v689 = vsel %vm433, 1.0, 0.0
        %v690 = vsel %vm434, 1.0, 0.0
        %v691 = vsel %vm435, 1.0, 0.0
        %v692 = vsel %vm436, 1.0, 0.0
        %v693 = vsel %vm437, 1.0, 0.0
        %v694 = vsel %vm438, 1.0, 0.0
        %v695 = vsel %vm439, 1.0, 0.0
        %v696 = vsel %vm440, 1.0, 0.0
        %v697 = vsel %vm441, 1.0, 0.0
        %v698 = vsel %vm442, 1.0, 0.0
        %v699 = vsel %vm443, 1.0, 0.0
        %v700 = vsel %vm444, 1.0, 0.0
        %v701 = vsel %vm445, 1.0, 0.0
        %v702 = vsel %vm446, 1.0, 0.0
        %v703 = vsel %vm447, 1.0, 0.0
        %v704 = vsel %vm448, 1.0, 0.0
        %v705 = vsel %vm449, 1.0, 0.0
        %v706 = vsel %vm450, 1.0, 0.0
        %v707 = vsel %vm451, 1.0, 0.0
        %v708 = vsel %vm452, 1.0, 0.0
        %v709 = vsel %vm453, 1.0, 0.0
        %v710 = vsel %vm454, 1.0, 0.0
        %v711 = vsel %vm455, 1.0, 0.0
        %v712 = vsel %vm456, 1.0, 0.0
        %v713 = vsel %vm457, 1.0, 0.0
        %v714 = vsel %vm458, 1.0, 0.0
        %v715 = vsel %vm459, 1.0, 0.0
        %v716 = vsel %vm460, 1.0, 0.0
        %v717 = vsel %vm461, 1.0, 0.0
        %v718 = vsel %vm462, 1.0, 0.0
        %v719 = vsel %vm463, 1.0, 0.0
        %v720 = vsel %vm464, 1.0, 0.0
        %v721 = vsel %vm465, 1.0, 0.0
        %v722 = vsel %vm466, 1.0, 0.0
        %v723 = vsel %vm467, 1.0, 0.0
        %v724 = vsel %vm468, 1.0, 0.0
        %v725 = vsel %vm469, 1.0, 0.0
        %v726 = vsel %vm470, 1.0, 0.0
        %v727 = vsel %vm471, 1.0, 0.0
        %v728 = vsel %vm472, 1.0, 0.0
        %v729 = vsel %vm473, 1.0, 0.0
        %v730 = vsel %vm474, 1.0, 0.0
        %v731 = vsel %vm475, 1.0, 0.0
        %v732 = vsel %vm476, 1.0, 0.0
        %v733 = vsel %vm477, 1.0, 0.0
        %v734 = vsel %vm478, 1.0, 0.0
        %v735 = vsel %vm479, 1.0, 0.0
        %v736 = vsel %vm480, 1.0, 0.0
        %v737 = vsel %vm481, 1.0, 0.0
        %v738 = vsel %vm482, 1.0, 0.0
        %v739 = vsel %vm483, 1.0, 0.0
        %v740 = vsel %vm484, 1.0, 0.0
        %v741 = vsel %vm485, 1.0, 0.0
        %v742 = vsel %vm486, 1.0, 0.0
        %v743 = vsel %vm487, 1.0, 0.0
        %v744 = vsel %vm488, 1.0, 0.0
        %v745 = vsel %vm489, 1.0, 0.0
        %v746 = vsel %vm490, 1.0, 0.0
        %v747 = vsel %vm491, 1.0, 0.0
        %v748 = vsel %vm492, 1.0, 0.0
        %v749 = vsel %vm493, 1.0, 0.0
        %v750 = vsel %vm494, 1.0, 0.0
        %v751 = vsel %vm495, 1.0, 0.0
        %v752 = vsel %vm496, 1.0, 0.0
        %v753 = vsel %vm497, 1.0, 0.0
        %v754 = vsel %vm498, 1.0, 0.0
        %v755 = vsel %vm499, 1.0, 0.0
        %v756 = vsel %vm500, 1.0, 0.0
        %v757 = vsel %vm501, 1.0, 0.0
        %v758 = vsel %vm502, 1.0, 0.0
        %v759 = vsel %vm503, 1.0, 0.0
        %v760 = vsel %vm504, 1.0, 0.0
        %v761 = vsel %vm505, 1.0, 0.0
        %v762 = vsel %vm506, 1.0, 0.0
        %v763 = vpack.c.bf16 %v511, %v507
        %v764 = vpack.c.bf16 %v512, %v508
        %v765 = vpack.c.bf16 %v513, %v509
        %v766 = vpack.c.bf16 %v514, %v510
        %v767 = vpack.c.bf16 %v519, %v515
        %v768 = vpack.c.bf16 %v520, %v516
        %v769 = vpack.c.bf16 %v521, %v517
        %v770 = vpack.c.bf16 %v522, %v518
        %v771 = vpack.c.bf16 %v527, %v523
        %v772 = vpack.c.bf16 %v528, %v524
        %v773 = vpack.c.bf16 %v529, %v525
        %v774 = vpack.c.bf16 %v530, %v526
        %v775 = vpack.c.bf16 %v535, %v531
        %v776 = vpack.c.bf16 %v536, %v532
        %v777 = vpack.c.bf16 %v537, %v533
        %v778 = vpack.c.bf16 %v538, %v534
        %v779 = vpack.c.bf16 %v543, %v539
        %v780 = vpack.c.bf16 %v544, %v540
        %v781 = vpack.c.bf16 %v545, %v541
        %v782 = vpack.c.bf16 %v546, %v542
        %v783 = vpack.c.bf16 %v551, %v547
        %v784 = vpack.c.bf16 %v552, %v548
        %v785 = vpack.c.bf16 %v553, %v549
        %v786 = vpack.c.bf16 %v554, %v550
        %v787 = vpack.c.bf16 %v559, %v555
        %v788 = vpack.c.bf16 %v560, %v556
        %v789 = vpack.c.bf16 %v561, %v557
        %v790 = vpack.c.bf16 %v562, %v558
        %v791 = vpack.c.bf16 %v567, %v563
        %v792 = vpack.c.bf16 %v568, %v564
        %v793 = vpack.c.bf16 %v569, %v565
        %v794 = vpack.c.bf16 %v570, %v566
        %v795 = vpack.c.bf16 %v575, %v571
        %v796 = vpack.c.bf16 %v576, %v572
        %v797 = vpack.c.bf16 %v577, %v573
        %v798 = vpack.c.bf16 %v578, %v574
        %v799 = vpack.c.bf16 %v583, %v579
        %v800 = vpack.c.bf16 %v584, %v580
        %v801 = vpack.c.bf16 %v585, %v581
        %v802 = vpack.c.bf16 %v586, %v582
        %v803 = vpack.c.bf16 %v591, %v587
        %v804 = vpack.c.bf16 %v592, %v588
        %v805 = vpack.c.bf16 %v593, %v589
        %v806 = vpack.c.bf16 %v594, %v590
        %v807 = vpack.c.bf16 %v599, %v595
        %v808 = vpack.c.bf16 %v600, %v596
        %v809 = vpack.c.bf16 %v601, %v597
        %v810 = vpack.c.bf16 %v602, %v598
        %v811 = vpack.c.bf16 %v607, %v603
        %v812 = vpack.c.bf16 %v608, %v604
        %v813 = vpack.c.bf16 %v609, %v605
        %v814 = vpack.c.bf16 %v610, %v606
        %v815 = vpack.c.bf16 %v615, %v611
        %v816 = vpack.c.bf16 %v616, %v612
        %v817 = vpack.c.bf16 %v617, %v613
        %v818 = vpack.c.bf16 %v618, %v614
        %v819 = vpack.c.bf16 %v623, %v619
        %v820 = vpack.c.bf16 %v624, %v620
        %v821 = vpack.c.bf16 %v625, %v621
        %v822 = vpack.c.bf16 %v626, %v622
        %v823 = vpack.c.bf16 %v631, %v627
        %v824 = vpack.c.bf16 %v632, %v628
        %v825 = vpack.c.bf16 %v633, %v629
        %v826 = vpack.c.bf16 %v634, %v630
        %v827 = vpack.c.bf16 %v639, %v635
        %v828 = vpack.c.bf16 %v640, %v636
        %v829 = vpack.c.bf16 %v641, %v637
        %v830 = vpack.c.bf16 %v642, %v638
        %v831 = vpack.c.bf16 %v647, %v643
        %v832 = vpack.c.bf16 %v648, %v644
        %v833 = vpack.c.bf16 %v649, %v645
        %v834 = vpack.c.bf16 %v650, %v646
        %v835 = vpack.c.bf16 %v655, %v651
        %v836 = vpack.c.bf16 %v656, %v652
        %v837 = vpack.c.bf16 %v657, %v653
        %v838 = vpack.c.bf16 %v658, %v654
        %v839 = vpack.c.bf16 %v663, %v659
        %v840 = vpack.c.bf16 %v664, %v660
        %v841 = vpack.c.bf16 %v665, %v661
        %v842 = vpack.c.bf16 %v666, %v662
        %v843 = vpack.c.bf16 %v671, %v667
        %v844 = vpack.c.bf16 %v672, %v668
        %v845 = vpack.c.bf16 %v673, %v669
        %v846 = vpack.c.bf16 %v674, %v670
        %v847 = vpack.c.bf16 %v679, %v675
        %v848 = vpack.c.bf16 %v680, %v676
        %v849 = vpack.c.bf16 %v681, %v677
        %v850 = vpack.c.bf16 %v682, %v678
        %v851 = vpack.c.bf16 %v687, %v683
        %v852 = vpack.c.bf16 %v688, %v684
        %v853 = vpack.c.bf16 %v689, %v685
        %v854 = vpack.c.bf16 %v690, %v686
        %v855 = vpack.c.bf16 %v695, %v691
        %v856 = vpack.c.bf16 %v696, %v692
        %v857 = vpack.c.bf16 %v697, %v693
        %v858 = vpack.c.bf16 %v698, %v694
        %v859 = vpack.c.bf16 %v703, %v699
        %v860 = vpack.c.bf16 %v704, %v700
        %v861 = vpack.c.bf16 %v705, %v701
        %v862 = vpack.c.bf16 %v706, %v702
        %v863 = vpack.c.bf16 %v711, %v707
        %v864 = vpack.c.bf16 %v712, %v708
        %v865 = vpack.c.bf16 %v713, %v709
        %v866 = vpack.c.bf16 %v714, %v710
        %v867 = vpack.c.bf16 %v719, %v715
        %v868 = vpack.c.bf16 %v720, %v716
        %v869 = vpack.c.bf16 %v721, %v717
        %v870 = vpack.c.bf16 %v722, %v718
        %v871 = vpack.c.bf16 %v727, %v723
        %v872 = vpack.c.bf16 %v728, %v724
        %v873 = vpack.c.bf16 %v729, %v725
        %v874 = vpack.c.bf16 %v730, %v726
        %v875 = vpack.c.bf16 %v735, %v731
        %v876 = vpack.c.bf16 %v736, %v732
        %v877 = vpack.c.bf16 %v737, %v733
        %v878 = vpack.c.bf16 %v738, %v734
        %v879 = vpack.c.bf16 %v743, %v739
        %v880 = vpack.c.bf16 %v744, %v740
        %v881 = vpack.c.bf16 %v745, %v741
        %v882 = vpack.c.bf16 %v746, %v742
        %v883 = vpack.c.bf16 %v751, %v747
        %v884 = vpack.c.bf16 %v752, %v748
        %v885 = vpack.c.bf16 %v753, %v749
        %v886 = vpack.c.bf16 %v754, %v750
        %v887 = vpack.c.bf16 %v759, %v755
        %v888 = vpack.c.bf16 %v760, %v756
        %v889 = vpack.c.bf16 %v761, %v757
        %v890 = vpack.c.bf16 %v762, %v758
        %891 = vst [vmem:[#allocation2] sm:$0xff] %v763
        %892 = vst [vmem:[#allocation2 + $0x8] sm:$0xff] %v764
        %893 = vst [vmem:[#allocation2 + $0x10] sm:$0xff] %v765
        %894 = vst [vmem:[#allocation2 + $0x18] sm:$0xff] %v766
        %895 = vst [vmem:[#allocation2 + $0x20] sm:$0xff] %v767
        %896 = vst [vmem:[#allocation2 + $0x28] sm:$0xff] %v768
        %897 = vst [vmem:[#allocation2 + $0x30] sm:$0xff] %v769
        %898 = vst [vmem:[#allocation2 + $0x38] sm:$0xff] %v770
        %899 = vst [vmem:[#allocation2 + $0x40] sm:$0xff] %v771
        %900 = vst [vmem:[#allocation2 + $0x48] sm:$0xff] %v772
        %901 = vst [vmem:[#allocation2 + $0x50] sm:$0xff] %v773
        %902 = vst [vmem:[#allocation2 + $0x58] sm:$0xff] %v774
        %903 = vst [vmem:[#allocation2 + $0x60] sm:$0xff] %v775
        %904 = vst [vmem:[#allocation2 + $0x68] sm:$0xff] %v776
        %905 = vst [vmem:[#allocation2 + $0x70] sm:$0xff] %v777
        %906 = vst [vmem:[#allocation2 + $0x78] sm:$0xff] %v778
        %907 = vst [vmem:[#allocation2 + $0x80] sm:$0xff] %v779
        %908 = vst [vmem:[#allocation2 + $0x88] sm:$0xff] %v780
        %909 = vst [vmem:[#allocation2 + $0x90] sm:$0xff] %v781
        %910 = vst [vmem:[#allocation2 + $0x98] sm:$0xff] %v782
        %911 = vst [vmem:[#allocation2 + $0xa0] sm:$0xff] %v783
        %912 = vst [vmem:[#allocation2 + $0xa8] sm:$0xff] %v784
        %913 = vst [vmem:[#allocation2 + $0xb0] sm:$0xff] %v785
        %914 = vst [vmem:[#allocation2 + $0xb8] sm:$0xff] %v786
        %915 = vst [vmem:[#allocation2 + $0xc0] sm:$0xff] %v787
        %916 = vst [vmem:[#allocation2 + $0xc8] sm:$0xff] %v788
        %917 = vst [vmem:[#allocation2 + $0xd0] sm:$0xff] %v789
        %918 = vst [vmem:[#allocation2 + $0xd8] sm:$0xff] %v790
        %919 = vst [vmem:[#allocation2 + $0xe0] sm:$0xff] %v791
        %920 = vst [vmem:[#allocation2 + $0xe8] sm:$0xff] %v792
        %921 = vst [vmem:[#allocation2 + $0xf0] sm:$0xff] %v793
        %922 = vst [vmem:[#allocation2 + $0xf8] sm:$0xff] %v794
        %923 = vst [vmem:[#allocation2 + $0x100] sm:$0xff] %v795
        %924 = vst [vmem:[#allocation2 + $0x108] sm:$0xff] %v796
        %925 = vst [vmem:[#allocation2 + $0x110] sm:$0xff] %v797
        %926 = vst [vmem:[#allocation2 + $0x118] sm:$0xff] %v798
        %927 = vst [vmem:[#allocation2 + $0x120] sm:$0xff] %v799
        %928 = vst [vmem:[#allocation2 + $0x128] sm:$0xff] %v800
        %929 = vst [vmem:[#allocation2 + $0x130] sm:$0xff] %v801
        %930 = vst [vmem:[#allocation2 + $0x138] sm:$0xff] %v802
        %931 = vst [vmem:[#allocation2 + $0x140] sm:$0xff] %v803
        %932 = vst [vmem:[#allocation2 + $0x148] sm:$0xff] %v804
        %933 = vst [vmem:[#allocation2 + $0x150] sm:$0xff] %v805
        %934 = vst [vmem:[#allocation2 + $0x158] sm:$0xff] %v806
        %935 = vst [vmem:[#allocation2 + $0x160] sm:$0xff] %v807
        %936 = vst [vmem:[#allocation2 + $0x168] sm:$0xff] %v808
        %937 = vst [vmem:[#allocation2 + $0x170] sm:$0xff] %v809
        %938 = vst [vmem:[#allocation2 + $0x178] sm:$0xff] %v810
        %939 = vst [vmem:[#allocation2 + $0x180] sm:$0xff] %v811
        %940 = vst [vmem:[#allocation2 + $0x188] sm:$0xff] %v812
        %941 = vst [vmem:[#allocation2 + $0x190] sm:$0xff] %v813
        %942 = vst [vmem:[#allocation2 + $0x198] sm:$0xff] %v814
        %943 = vst [vmem:[#allocation2 + $0x1a0] sm:$0xff] %v815
        %944 = vst [vmem:[#allocation2 + $0x1a8] sm:$0xff] %v816
        %945 = vst [vmem:[#allocation2 + $0x1b0] sm:$0xff] %v817
        %946 = vst [vmem:[#allocation2 + $0x1b8] sm:$0xff] %v818
        %947 = vst [vmem:[#allocation2 + $0x1c0] sm:$0xff] %v819
        %948 = vst [vmem:[#allocation2 + $0x1c8] sm:$0xff] %v820
        %949 = vst [vmem:[#allocation2 + $0x1d0] sm:$0xff] %v821
        %950 = vst [vmem:[#allocation2 + $0x1d8] sm:$0xff] %v822
        %951 = vst [vmem:[#allocation2 + $0x1e0] sm:$0xff] %v823
        %952 = vst [vmem:[#allocation2 + $0x1e8] sm:$0xff] %v824
        %953 = vst [vmem:[#allocation2 + $0x1f0] sm:$0xff] %v825
        %954 = vst [vmem:[#allocation2 + $0x1f8] sm:$0xff] %v826
        %955 = vst [vmem:[#allocation2 + $0x200] sm:$0xff] %v827
        %956 = vst [vmem:[#allocation2 + $0x208] sm:$0xff] %v828
        %957 = vst [vmem:[#allocation2 + $0x210] sm:$0xff] %v829
        %958 = vst [vmem:[#allocation2 + $0x218] sm:$0xff] %v830
        %959 = vst [vmem:[#allocation2 + $0x220] sm:$0xff] %v831
        %960 = vst [vmem:[#allocation2 + $0x228] sm:$0xff] %v832
        %961 = vst [vmem:[#allocation2 + $0x230] sm:$0xff] %v833
        %962 = vst [vmem:[#allocation2 + $0x238] sm:$0xff] %v834
        %963 = vst [vmem:[#allocation2 + $0x240] sm:$0xff] %v835
        %964 = vst [vmem:[#allocation2 + $0x248] sm:$0xff] %v836
        %965 = vst [vmem:[#allocation2 + $0x250] sm:$0xff] %v837
        %966 = vst [vmem:[#allocation2 + $0x258] sm:$0xff] %v838
        %967 = vst [vmem:[#allocation2 + $0x260] sm:$0xff] %v839
        %968 = vst [vmem:[#allocation2 + $0x268] sm:$0xff] %v840
        %969 = vst [vmem:[#allocation2 + $0x270] sm:$0xff] %v841
        %970 = vst [vmem:[#allocation2 + $0x278] sm:$0xff] %v842
        %971 = vst [vmem:[#allocation2 + $0x280] sm:$0xff] %v843
        %972 = vst [vmem:[#allocation2 + $0x288] sm:$0xff] %v844
        %973 = vst [vmem:[#allocation2 + $0x290] sm:$0xff] %v845
        %974 = vst [vmem:[#allocation2 + $0x298] sm:$0xff] %v846
        %975 = vst [vmem:[#allocation2 + $0x2a0] sm:$0xff] %v847
        %976 = vst [vmem:[#allocation2 + $0x2a8] sm:$0xff] %v848
        %977 = vst [vmem:[#allocation2 + $0x2b0] sm:$0xff] %v849
        %978 = vst [vmem:[#allocation2 + $0x2b8] sm:$0xff] %v850
        %979 = vst [vmem:[#allocation2 + $0x2c0] sm:$0xff] %v851
        %980 = vst [vmem:[#allocation2 + $0x2c8] sm:$0xff] %v852
        %981 = vst [vmem:[#allocation2 + $0x2d0] sm:$0xff] %v853
        %982 = vst [vmem:[#allocation2 + $0x2d8] sm:$0xff] %v854
        %983 = vst [vmem:[#allocation2 + $0x2e0] sm:$0xff] %v855
        %984 = vst [vmem:[#allocation2 + $0x2e8] sm:$0xff] %v856
        %985 = vst [vmem:[#allocation2 + $0x2f0] sm:$0xff] %v857
        %986 = vst [vmem:[#allocation2 + $0x2f8] sm:$0xff] %v858
        %987 = vst [vmem:[#allocation2 + $0x300] sm:$0xff] %v859
        %988 = vst [vmem:[#allocation2 + $0x308] sm:$0xff] %v860
        %989 = vst [vmem:[#allocation2 + $0x310] sm:$0xff] %v861
        %990 = vst [vmem:[#allocation2 + $0x318] sm:$0xff] %v862
        %991 = vst [vmem:[#allocation2 + $0x320] sm:$0xff] %v863
        %992 = vst [vmem:[#allocation2 + $0x328] sm:$0xff] %v864
        %993 = vst [vmem:[#allocation2 + $0x330] sm:$0xff] %v865
        %994 = vst [vmem:[#allocation2 + $0x338] sm:$0xff] %v866
        %995 = vst [vmem:[#allocation2 + $0x340] sm:$0xff] %v867
        %996 = vst [vmem:[#allocation2 + $0x348] sm:$0xff] %v868
        %997 = vst [vmem:[#allocation2 + $0x350] sm:$0xff] %v869
        %998 = vst [vmem:[#allocation2 + $0x358] sm:$0xff] %v870
        %999 = vst [vmem:[#allocation2 + $0x360] sm:$0xff] %v871
        %1000 = vst [vmem:[#allocation2 + $0x368] sm:$0xff] %v872
        %1001 = vst [vmem:[#allocation2 + $0x370] sm:$0xff] %v873
        %1002 = vst [vmem:[#allocation2 + $0x378] sm:$0xff] %v874
        %1003 = vst [vmem:[#allocation2 + $0x380] sm:$0xff] %v875
        %1004 = vst [vmem:[#allocation2 + $0x388] sm:$0xff] %v876
        %1005 = vst [vmem:[#allocation2 + $0x390] sm:$0xff] %v877
        %1006 = vst [vmem:[#allocation2 + $0x398] sm:$0xff] %v878
        %1007 = vst [vmem:[#allocation2 + $0x3a0] sm:$0xff] %v879
        %1008 = vst [vmem:[#allocation2 + $0x3a8] sm:$0xff] %v880
        %1009 = vst [vmem:[#allocation2 + $0x3b0] sm:$0xff] %v881
        %1010 = vst [vmem:[#allocation2 + $0x3b8] sm:$0xff] %v882
        %1011 = vst [vmem:[#allocation2 + $0x3c0] sm:$0xff] %v883
        %1012 = vst [vmem:[#allocation2 + $0x3c8] sm:$0xff] %v884
        %1013 = vst [vmem:[#allocation2 + $0x3d0] sm:$0xff] %v885
        %1014 = vst [vmem:[#allocation2 + $0x3d8] sm:$0xff] %v886
        %1015 = vst [vmem:[#allocation2 + $0x3e0] sm:$0xff] %v887
        %1016 = vst [vmem:[#allocation2 + $0x3e8] sm:$0xff] %v888
        %1017 = vst [vmem:[#allocation2 + $0x3f0] sm:$0xff] %v889
        %1018 = vst [vmem:[#allocation2 + $0x3f8] sm:$0xff] %v890
        %vm1019 = vcmask 1024
        %1020 = vst.msk [vmem:[%s3] sm:$0x3] %vm1019, 0.0
        %1021 = vst.msk [vmem:[#allocation3] sm:$0x3] %vm1019, 0.0
        %1022 = vst.msk [vmem:[#allocation4] sm:$0x3] %vm1019, 0.0
      $region36: #{lovasz_loss.1} parent=31 // pred_fallthru
        _
      %v1023 = vld [vmem:[%s170] sm:$0xff]
      %v1024 = vsub.f32 0.0, %v1023
      %v1025 = vmax.f32 %v1024, 0.0
      %v1026 = vld [vmem:[%s175] sm:$0xf]
      %v1027 = vld [vmem:[%s0] sm:$0x3]
      %v1028 = vld [vmem:[#allocation2] sm:$0xff]
      %v1029 = vld [vmem:[#allocation2 + $0x8] sm:$0xff]
      %v1030 = vld [vmem:[#allocation2 + $0x10] sm:$0xff]
      %v1031 = vld [vmem:[#allocation2 + $0x18] sm:$0xff]
      %v1032 = vld [vmem:[#allocation2 + $0x20] sm:$0xff]
      %v1033 = vld [vmem:[#allocation2 + $0x28] sm:$0xff]
      %v1034 = vld [vmem:[#allocation2 + $0x30] sm:$0xff]
      %v1035 = vld [vmem:[#allocation2 + $0x38] sm:$0xff]
      %v1036 = vld [vmem:[#allocation2 + $0x40] sm:$0xff]
      %v1037 = vld [vmem:[#allocation2 + $0x48] sm:$0xff]
      %v1038 = vld [vmem:[#allocation2 + $0x50] sm:$0xff]
      %v1039 = vld [vmem:[#allocation2 + $0x58] sm:$0xff]
      %v1040 = vld [vmem:[#allocation2 + $0x60] sm:$0xff]
      %v1041 = vld [vmem:[#allocation2 + $0x68] sm:$0xff]
      %v1042 = vld [vmem:[#allocation2 + $0x70] sm:$0xff]
      %v1043 = vld [vmem:[#allocation2 + $0x78] sm:$0xff]
      %v1044 = vld [vmem:[#allocation2 + $0x80] sm:$0xff]
      %v1045 = vld [vmem:[#allocation2 + $0x88] sm:$0xff]
      %v1046 = vld [vmem:[#allocation2 + $0x90] sm:$0xff]
      %v1047 = vld [vmem:[#allocation2 + $0x98] sm:$0xff]
      %v1048 = vld [vmem:[#allocation2 + $0xa0] sm:$0xff]
      %v1049 = vld [vmem:[#allocation2 + $0xa8] sm:$0xff]
      %v1050 = vld [vmem:[#allocation2 + $0xb0] sm:$0xff]
      %v1051 = vld [vmem:[#allocation2 + $0xb8] sm:$0xff]
      %v1052 = vld [vmem:[#allocation2 + $0xc0] sm:$0xff]
      %v1053 = vld [vmem:[#allocation2 + $0xc8] sm:$0xff]
      %v1054 = vld [vmem:[#allocation2 + $0xd0] sm:$0xff]
      %v1055 = vld [vmem:[#allocation2 + $0xd8] sm:$0xff]
      %v1056 = vld [vmem:[#allocation2 + $0xe0] sm:$0xff]
      %v1057 = vld [vmem:[#allocation2 + $0xe8] sm:$0xff]
      %v1058 = vld [vmem:[#allocation2 + $0xf0] sm:$0xff]
      %v1059 = vld [vmem:[#allocation2 + $0xf8] sm:$0xff]
      %v1060 = vld [vmem:[#allocation2 + $0x100] sm:$0xff]
      %v1061 = vld [vmem:[#allocation2 + $0x108] sm:$0xff]
      %v1062 = vld [vmem:[#allocation2 + $0x110] sm:$0xff]
      %v1063 = vld [vmem:[#allocation2 + $0x118] sm:$0xff]
      %v1064 = vld [vmem:[#allocation2 + $0x120] sm:$0xff]
      %v1065 = vld [vmem:[#allocation2 + $0x128] sm:$0xff]
      %v1066 = vld [vmem:[#allocation2 + $0x130] sm:$0xff]
      %v1067 = vld [vmem:[#allocation2 + $0x138] sm:$0xff]
      %v1068 = vld [vmem:[#allocation2 + $0x140] sm:$0xff]
      %v1069 = vld [vmem:[#allocation2 + $0x148] sm:$0xff]
      %v1070 = vld [vmem:[#allocation2 + $0x150] sm:$0xff]
      %v1071 = vld [vmem:[#allocation2 + $0x158] sm:$0xff]
      %v1072 = vld [vmem:[#allocation2 + $0x160] sm:$0xff]
      %v1073 = vld [vmem:[#allocation2 + $0x168] sm:$0xff]
      %v1074 = vld [vmem:[#allocation2 + $0x170] sm:$0xff]
      %v1075 = vld [vmem:[#allocation2 + $0x178] sm:$0xff]
      %v1076 = vld [vmem:[#allocation2 + $0x180] sm:$0xff]
      %v1077 = vld [vmem:[#allocation2 + $0x188] sm:$0xff]
      %v1078 = vld [vmem:[#allocation2 + $0x190] sm:$0xff]
      %v1079 = vld [vmem:[#allocation2 + $0x198] sm:$0xff]
      %v1080 = vld [vmem:[#allocation2 + $0x1a0] sm:$0xff]
      %v1081 = vld [vmem:[#allocation2 + $0x1a8] sm:$0xff]
      %v1082 = vld [vmem:[#allocation2 + $0x1b0] sm:$0xff]
      %v1083 = vld [vmem:[#allocation2 + $0x1b8] sm:$0xff]
      %v1084 = vld [vmem:[#allocation2 + $0x1c0] sm:$0xff]
      %v1085 = vld [vmem:[#allocation2 + $0x1c8] sm:$0xff]
      %v1086 = vld [vmem:[#allocation2 + $0x1d0] sm:$0xff]
      %v1087 = vld [vmem:[#allocation2 + $0x1d8] sm:$0xff]
      %v1088 = vld [vmem:[#allocation2 + $0x1e0] sm:$0xff]
      %v1089 = vld [vmem:[#allocation2 + $0x1e8] sm:$0xff]
      %v1090 = vld [vmem:[#allocation2 + $0x1f0] sm:$0xff]
      %v1091 = vld [vmem:[#allocation2 + $0x1f8] sm:$0xff]
      %v1092 = vld [vmem:[#allocation2 + $0x200] sm:$0xff]
      %v1093 = vld [vmem:[#allocation2 + $0x208] sm:$0xff]
      %v1094 = vld [vmem:[#allocation2 + $0x210] sm:$0xff]
      %v1095 = vld [vmem:[#allocation2 + $0x218] sm:$0xff]
      %v1096 = vld [vmem:[#allocation2 + $0x220] sm:$0xff]
      %v1097 = vld [vmem:[#allocation2 + $0x228] sm:$0xff]
      %v1098 = vld [vmem:[#allocation2 + $0x230] sm:$0xff]
      %v1099 = vld [vmem:[#allocation2 + $0x238] sm:$0xff]
      %v1100 = vld [vmem:[#allocation2 + $0x240] sm:$0xff]
      %v1101 = vld [vmem:[#allocation2 + $0x248] sm:$0xff]
      %v1102 = vld [vmem:[#allocation2 + $0x250] sm:$0xff]
      %v1103 = vld [vmem:[#allocation2 + $0x258] sm:$0xff]
      %v1104 = vld [vmem:[#allocation2 + $0x260] sm:$0xff]
      %v1105 = vld [vmem:[#allocation2 + $0x268] sm:$0xff]
      %v1106 = vld [vmem:[#allocation2 + $0x270] sm:$0xff]
      %v1107 = vld [vmem:[#allocation2 + $0x278] sm:$0xff]
      %v1108 = vld [vmem:[#allocation2 + $0x280] sm:$0xff]
      %v1109 = vld [vmem:[#allocation2 + $0x288] sm:$0xff]
      %v1110 = vld [vmem:[#allocation2 + $0x290] sm:$0xff]
      %v1111 = vld [vmem:[#allocation2 + $0x298] sm:$0xff]
      %v1112 = vld [vmem:[#allocation2 + $0x2a0] sm:$0xff]
      %v1113 = vld [vmem:[#allocation2 + $0x2a8] sm:$0xff]
      %v1114 = vld [vmem:[#allocation2 + $0x2b0] sm:$0xff]
      %v1115 = vld [vmem:[#allocation2 + $0x2b8] sm:$0xff]
      %v1116 = vld [vmem:[#allocation2 + $0x2c0] sm:$0xff]
      %v1117 = vld [vmem:[#allocation2 + $0x2c8] sm:$0xff]
      %v1118 = vld [vmem:[#allocation2 + $0x2d0] sm:$0xff]
      %v1119 = vld [vmem:[#allocation2 + $0x2d8] sm:$0xff]
      %v1120 = vld [vmem:[#allocation2 + $0x2e0] sm:$0xff]
      %v1121 = vld [vmem:[#allocation2 + $0x2e8] sm:$0xff]
      %v1122 = vld [vmem:[#allocation2 + $0x2f0] sm:$0xff]
      %v1123 = vld [vmem:[#allocation2 + $0x2f8] sm:$0xff]
      %v1124 = vld [vmem:[#allocation2 + $0x300] sm:$0xff]
      %v1125 = vld [vmem:[#allocation2 + $0x308] sm:$0xff]
      %v1126 = vld [vmem:[#allocation2 + $0x310] sm:$0xff]
      %v1127 = vld [vmem:[#allocation2 + $0x318] sm:$0xff]
      %v1128 = vld [vmem:[#allocation2 + $0x320] sm:$0xff]
      %v1129 = vld [vmem:[#allocation2 + $0x328] sm:$0xff]
      %v1130 = vld [vmem:[#allocation2 + $0x330] sm:$0xff]
      %v1131 = vld [vmem:[#allocation2 + $0x338] sm:$0xff]
      %v1132 = vld [vmem:[#allocation2 + $0x340] sm:$0xff]
      %v1133 = vld [vmem:[#allocation2 + $0x348] sm:$0xff]
      %v1134 = vld [vmem:[#allocation2 + $0x350] sm:$0xff]
      %v1135 = vld [vmem:[#allocation2 + $0x358] sm:$0xff]
      %v1136 = vld [vmem:[#allocation2 + $0x360] sm:$0xff]
      %v1137 = vld [vmem:[#allocation2 + $0x368] sm:$0xff]
      %v1138 = vld [vmem:[#allocation2 + $0x370] sm:$0xff]
      %v1139 = vld [vmem:[#allocation2 + $0x378] sm:$0xff]
      %v1140 = vld [vmem:[#allocation2 + $0x380] sm:$0xff]
      %v1141 = vld [vmem:[#allocation2 + $0x388] sm:$0xff]
      %v1142 = vld [vmem:[#allocation2 + $0x390] sm:$0xff]
      %v1143 = vld [vmem:[#allocation2 + $0x398] sm:$0xff]
      %v1144 = vld [vmem:[#allocation2 + $0x3a0] sm:$0xff]
      %v1145 = vld [vmem:[#allocation2 + $0x3a8] sm:$0xff]
      %v1146 = vld [vmem:[#allocation2 + $0x3b0] sm:$0xff]
      %v1147 = vld [vmem:[#allocation2 + $0x3b8] sm:$0xff]
      %v1148 = vld [vmem:[#allocation2 + $0x3c0] sm:$0xff]
      %v1149 = vld [vmem:[#allocation2 + $0x3c8] sm:$0xff]
      %v1150 = vld [vmem:[#allocation2 + $0x3d0] sm:$0xff]
      %v1151 = vld [vmem:[#allocation2 + $0x3d8] sm:$0xff]
      %v1152 = vld [vmem:[#allocation2 + $0x3e0] sm:$0xff]
      %v1153 = vld [vmem:[#allocation2 + $0x3e8] sm:$0xff]
      %v1154 = vld [vmem:[#allocation2 + $0x3f0] sm:$0xff]
      %v1155 = vld [vmem:[#allocation2 + $0x3f8] sm:$0xff]
      %v1156 = vld [vmem:[#allocation3] sm:$0x3]
      %1158 = vset.pattern.permute.xlu0 0
      %1159 = vperm.xlu0 %1158, %v1156
      %v1160 = vpop.permute.xlu0 %1159
      %v1164 = vunpack.c.l.s4 1966171168
      %v1165 = vunpack.c.0.s8 %v1164
      %v1166 = vlaneseq
      %v1167 = vshrl.u32 %v1166, 7
      %v1168 = vsub.s32 %v1165, %v1167
      %v1169 = vrot.slane %v1026, %v1168
      %v1170 = vcombine.high %v1169, %v1169
      %v1172 = vunpack.c.l.s4 1966171168
      %v1173 = vunpack.c.0.s8 %v1172
      %v1174 = vlaneseq
      %v1175 = vshrl.u32 %v1174, 7
      %v1176 = vsub.s32 %v1173, %v1175
      %v1177 = vrot.slane %v1169, %v1176
      %v1179 = vunpack.c.l.s4 1966171168
      %v1180 = vunpack.c.0.s8 %v1179
      %v1181 = vlaneseq
      %v1182 = vshrl.u32 %v1181, 7
      %v1183 = vsub.s32 %v1180, %v1182
      %v1184 = vrot.slane %v1170, %v1183
      %v1185 = vcombine.high %v1177, %v1177
      %v1186 = vcombine.high %v1184, %v1184
      %1191 = vmatprep.subr.bf16.mxu0 %v1029
      %1192 = vmatpush1.bf16.msra.mxu0 %v1028
      %1193 = vmatprep.subr.bf16.mxu0 %v1033
      %1194 = vmatpush1.bf16.msra.mxu0 %v1032
      %1195 = vmatprep.subr.bf16.mxu0 %v1037
      %1196 = vmatpush1.bf16.msra.mxu0 %v1036
      %1197 = vmatprep.subr.bf16.mxu0 %v1041
      %1198 = vmatpush1.bf16.msra.mxu0 %v1040
      %1199 = vmatprep.subr.bf16.mxu0 %v1045
      %1200 = vmatpush1.bf16.msra.mxu0 %v1044
      %1201 = vmatprep.subr.bf16.mxu0 %v1049
      %1202 = vmatpush1.bf16.msra.mxu0 %v1048
      %1203 = vmatprep.subr.bf16.mxu0 %v1053
      %1204 = vmatpush1.bf16.msra.mxu0 %v1052
      %1205 = vmatprep.subr.bf16.mxu0 %v1057
      %1206 = vmatpush1.bf16.msra.mxu0 %v1056
      %1207 = vmatprep.subr.bf16.mxu0 %v1061
      %1208 = vmatpush1.bf16.msra.mxu0 %v1060
      %1209 = vmatprep.subr.bf16.mxu0 %v1065
      %1210 = vmatpush1.bf16.msra.mxu0 %v1064
      %1211 = vmatprep.subr.bf16.mxu0 %v1069
      %1212 = vmatpush1.bf16.msra.mxu0 %v1068
      %1213 = vmatprep.subr.bf16.mxu0 %v1073
      %1214 = vmatpush1.bf16.msra.mxu0 %v1072
      %1215 = vmatprep.subr.bf16.mxu0 %v1077
      %1216 = vmatpush1.bf16.msra.mxu0 %v1076
      %1217 = vmatprep.subr.bf16.mxu0 %v1081
      %1218 = vmatpush1.bf16.msra.mxu0 %v1080
      %1219 = vmatprep.subr.bf16.mxu0 %v1085
      %1220 = vmatpush1.bf16.msra.mxu0 %v1084
      %1221 = vmatprep.subr.bf16.mxu0 %v1089
      %1222 = vmatpush1.bf16.msra.mxu0 %v1088
      %1223 = vmatprep.mubr.bf16.mxu0 %v1184
      %1224 = vmatmul.mubr.bf16.gmra.mrb[0].mxu0 %v1177
      %v1225 = vpop.f32.mrb[0].mxu0
      %v1226 = vadd.f32 %v1160, %v1225
      %v1227 = vpop.f32.mrb[0].mxu0
      %v1228 = vadd.f32 %v1160, %v1227
      %v1229 = vpop.f32.mrb[0].mxu0
      %v1230 = vpop.f32.mrb[0].mxu0
      %1231 = vdwg.mxu0
      %1232 = vmatprep.subr.bf16.mxu0 %v1093
      %1233 = vmatpush1.bf16.msra.mxu0 %v1092
      %1234 = vmatprep.subr.bf16.mxu0 %v1097
      %1235 = vmatpush1.bf16.msra.mxu0 %v1096
      %1236 = vmatprep.subr.bf16.mxu0 %v1101
      %1237 = vmatpush1.bf16.msra.mxu0 %v1100
      %1238 = vmatprep.subr.bf16.mxu0 %v1105
      %1239 = vmatpush1.bf16.msra.mxu0 %v1104
      %1240 = vmatprep.subr.bf16.mxu0 %v1109
      %1241 = vmatpush1.bf16.msra.mxu0 %v1108
      %1242 = vmatprep.subr.bf16.mxu0 %v1113
      %1243 = vmatpush1.bf16.msra.mxu0 %v1112
      %1244 = vmatprep.subr.bf16.mxu0 %v1117
      %1245 = vmatpush1.bf16.msra.mxu0 %v1116
      %1246 = vmatprep.subr.bf16.mxu0 %v1121
      %1247 = vmatpush1.bf16.msra.mxu0 %v1120
      %1248 = vmatprep.subr.bf16.mxu0 %v1125
      %1249 = vmatpush1.bf16.msra.mxu0 %v1124
      %1250 = vmatprep.subr.bf16.mxu0 %v1129
      %1251 = vmatpush1.bf16.msra.mxu0 %v1128
      %1252 = vmatprep.subr.bf16.mxu0 %v1133
      %1253 = vmatpush1.bf16.msra.mxu0 %v1132
      %1254 = vmatprep.subr.bf16.mxu0 %v1137
      %1255 = vmatpush1.bf16.msra.mxu0 %v1136
      %1256 = vmatprep.subr.bf16.mxu0 %v1141
      %1257 = vmatpush1.bf16.msra.mxu0 %v1140
      %1258 = vmatprep.subr.bf16.mxu0 %v1145
      %1259 = vmatpush1.bf16.msra.mxu0 %v1144
      %1260 = vmatprep.subr.bf16.mxu0 %v1149
      %1261 = vmatpush1.bf16.msra.mxu0 %v1148
      %1262 = vmatprep.subr.bf16.mxu0 %v1153
      %1263 = vmatpush1.bf16.msra.mxu0 %v1152
      %1264 = vmatprep.mubr.bf16.mxu0 %v1186
      %1265 = vmatmul.mubr.bf16.gmra.mrb[0].mxu0 %v1185
      %v1266 = vpop.f32.mrb[0].mxu0
      %v1267 = vadd.f32 %v1226, %v1266
      %v1268 = vpop.f32.mrb[0].mxu0
      %v1269 = vadd.f32 %v1228, %v1268
      %v1270 = vpop.f32.mrb[0].mxu0
      %v1271 = vpop.f32.mrb[0].mxu0
      %1272 = vdwg.mxu0
      %1273 = vmatprep.subr.bf16.mxu0 %v1031
      %1274 = vmatpush1.bf16.msra.mxu0 %v1030
      %1275 = vmatprep.subr.bf16.mxu0 %v1035
      %1276 = vmatpush1.bf16.msra.mxu0 %v1034
      %1277 = vmatprep.subr.bf16.mxu0 %v1039
      %1278 = vmatpush1.bf16.msra.mxu0 %v1038
      %1279 = vmatprep.subr.bf16.mxu0 %v1043
      %1280 = vmatpush1.bf16.msra.mxu0 %v1042
      %1281 = vmatprep.subr.bf16.mxu0 %v1047
      %1282 = vmatpush1.bf16.msra.mxu0 %v1046
      %1283 = vmatprep.subr.bf16.mxu0 %v1051
      %1284 = vmatpush1.bf16.msra.mxu0 %v1050
      %1285 = vmatprep.subr.bf16.mxu0 %v1055
      %1286 = vmatpush1.bf16.msra.mxu0 %v1054
      %1287 = vmatprep.subr.bf16.mxu0 %v1059
      %1288 = vmatpush1.bf16.msra.mxu0 %v1058
      %1289 = vmatprep.subr.bf16.mxu0 %v1063
      %1290 = vmatpush1.bf16.msra.mxu0 %v1062
      %1291 = vmatprep.subr.bf16.mxu0 %v1067
      %1292 = vmatpush1.bf16.msra.mxu0 %v1066
      %1293 = vmatprep.subr.bf16.mxu0 %v1071
      %1294 = vmatpush1.bf16.msra.mxu0 %v1070
      %1295 = vmatprep.subr.bf16.mxu0 %v1075
      %1296 = vmatpush1.bf16.msra.mxu0 %v1074
      %1297 = vmatprep.subr.bf16.mxu0 %v1079
      %1298 = vmatpush1.bf16.msra.mxu0 %v1078
      %1299 = vmatprep.subr.bf16.mxu0 %v1083
      %1300 = vmatpush1.bf16.msra.mxu0 %v1082
      %1301 = vmatprep.subr.bf16.mxu0 %v1087
      %1302 = vmatpush1.bf16.msra.mxu0 %v1086
      %1303 = vmatprep.subr.bf16.mxu0 %v1091
      %1304 = vmatpush1.bf16.msra.mxu0 %v1090
      %1305 = vmatprep.mubr.bf16.mxu0 %v1184
      %1306 = vmatmul.mubr.bf16.gmra.mrb[0].mxu0 %v1177
      %v1307 = vpop.f32.mrb[0].mxu0
      %v1308 = vadd.f32 %v1160, %v1307
      %v1309 = vpop.f32.mrb[0].mxu0
      %v1310 = vadd.f32 %v1160, %v1309
      %v1311 = vpop.f32.mrb[0].mxu0
      %v1312 = vpop.f32.mrb[0].mxu0
      %1313 = vdwg.mxu0
      %1314 = vmatprep.subr.bf16.mxu0 %v1095
      %1315 = vmatpush1.bf16.msra.mxu0 %v1094
      %1316 = vmatprep.subr.bf16.mxu0 %v1099
      %1317 = vmatpush1.bf16.msra.mxu0 %v1098
      %1318 = vmatprep.subr.bf16.mxu0 %v1103
      %1319 = vmatpush1.bf16.msra.mxu0 %v1102
      %1320 = vmatprep.subr.bf16.mxu0 %v1107
      %1321 = vmatpush1.bf16.msra.mxu0 %v1106
      %1322 = vmatprep.subr.bf16.mxu0 %v1111
      %1323 = vmatpush1.bf16.msra.mxu0 %v1110
      %1324 = vmatprep.subr.bf16.mxu0 %v1115
      %1325 = vmatpush1.bf16.msra.mxu0 %v1114
      %1326 = vmatprep.subr.bf16.mxu0 %v1119
      %1327 = vmatpush1.bf16.msra.mxu0 %v1118
      %1328 = vmatprep.subr.bf16.mxu0 %v1123
      %1329 = vmatpush1.bf16.msra.mxu0 %v1122
      %1330 = vmatprep.subr.bf16.mxu0 %v1127
      %1331 = vmatpush1.bf16.msra.mxu0 %v1126
      %1332 = vmatprep.subr.bf16.mxu0 %v1131
      %1333 = vmatpush1.bf16.msra.mxu0 %v1130
      %1334 = vmatprep.subr.bf16.mxu0 %v1135
      %1335 = vmatpush1.bf16.msra.mxu0 %v1134
      %1336 = vmatprep.subr.bf16.mxu0 %v1139
      %1337 = vmatpush1.bf16.msra.mxu0 %v1138
      %1338 = vmatprep.subr.bf16.mxu0 %v1143
      %1339 = vmatpush1.bf16.msra.mxu0 %v1142
      %1340 = vmatprep.subr.bf16.mxu0 %v1147
      %1341 = vmatpush1.bf16.msra.mxu0 %v1146
      %1342 = vmatprep.subr.bf16.mxu0 %v1151
      %1343 = vmatpush1.bf16.msra.mxu0 %v1150
      %1344 = vmatprep.subr.bf16.mxu0 %v1155
      %1345 = vmatpush1.bf16.msra.mxu0 %v1154
      %1346 = vmatprep.mubr.bf16.mxu0 %v1186
      %1347 = vmatmul.mubr.bf16.gmra.mrb[0].mxu0 %v1185
      %v1348 = vpop.f32.mrb[0].mxu0
      %v1349 = vadd.f32 %v1308, %v1348
      %v1350 = vpop.f32.mrb[0].mxu0
      %v1351 = vadd.f32 %v1310, %v1350
      %v1352 = vpop.f32.mrb[0].mxu0
      %v1353 = vpop.f32.mrb[0].mxu0
      %1354 = vdwg.mxu0
      %v1355 = vlaneseq
      %v1356 = vand.u32 %v1355, 127
      %v1357 = vadd.s32 %v1356, 128
      %v1358 = vadd.s32 %v1356, 256
      %v1359 = vadd.s32 %v1356, 384
      %v1360 = vadd.s32 %v1356, 1
      %v1361 = vadd.s32 %v1357, 1
      %v1362 = vadd.s32 %v1358, 1
      %v1363 = vadd.s32 %v1359, 1
      %s1364 = smul.u32 %s14, 512
      %v1365 = vstv %s1364
      %v1366 = vadd.s32 %v1360, %v1365
      %v1367 = vadd.s32 %v1361, %v1365
      %v1368 = vadd.s32 %v1362, %v1365
      %v1369 = vadd.s32 %v1363, %v1365
      %v1370 = vcvt.s32.f32 %v1366
      %v1371 = vcvt.s32.f32 %v1367
      %v1372 = vcvt.s32.f32 %v1368
      %v1373 = vcvt.s32.f32 %v1369
      %1375 = vset.pattern.permute.xlu0 0
      %1376 = vperm.xlu0 %1375, %v1027
      %v1377 = vpop.permute.xlu0 %1376
      %v1379 = vsub.f32 %v1377, %v1267
      %v1380 = vsub.f32 %v1377, %v1269
      %v1381 = vsub.f32 %v1377, %v1349
      %v1382 = vsub.f32 %v1377, %v1351
      %v1383 = vsub.f32 %v1370, %v1267
      %v1384 = vsub.f32 %v1371, %v1269
      %v1385 = vsub.f32 %v1372, %v1349
      %v1386 = vsub.f32 %v1373, %v1351
      %v1387 = vadd.f32 %v1377, %v1383
      %v1388 = vadd.f32 %v1377, %v1384
      %v1389 = vadd.f32 %v1377, %v1385
      %v1390 = vadd.f32 %v1377, %v1386
      %v1391 = vrcp.pop %v1387
      %v1392 = vmul.f32 %v1379, %v1391
      %v1393 = vrcp.pop %v1388
      %v1394 = vmul.f32 %v1380, %v1393
      %v1395 = vrcp.pop %v1389
      %v1396 = vmul.f32 %v1381, %v1395
      %v1397 = vrcp.pop %v1390
      %v1398 = vmul.f32 %v1382, %v1397
      %v1399 = vsub.f32 1.0, %v1392
      %v1400 = vsub.f32 1.0, %v1394
      %v1401 = vsub.f32 1.0, %v1396
      %v1402 = vsub.f32 1.0, %v1398
      %1403 = vrot.lane.b32.xlu0 %v1399, 1
      %v1404 = vpop.permute.xlu0 %1403
      %1405 = vrot.lane.b32.xlu0 %v1400, 1
      %v1406 = vpop.permute.xlu0 %1405
      %1407 = vrot.lane.b32.xlu0 %v1401, 1
      %v1408 = vpop.permute.xlu0 %1407
      %1409 = vrot.lane.b32.xlu0 %v1402, 1
      %v1410 = vpop.permute.xlu0 %1409
      %vm1411 = vcmp.lt.s32.totalorder %v1356, 1
      %v1412 = vsel %vm1411, %v1408, %v1410
      %v1413 = vsel %vm1411, %v1406, %v1408
      %v1414 = vsel %vm1411, %v1404, %v1406
      %v1415 = vsel %vm1411, %v1410, %v1404
      %vm1416 = vcmp.eq.s32.totalorder %v1356, 0
      %vm1417 = vcmp.eq.s32.totalorder %v1357, 0
      %vm1418 = vcmp.eq.s32.totalorder %v1358, 0
      %vm1419 = vcmp.eq.s32.totalorder %v1359, 0
      %v1420 = vsel %vm1416, 0.0, %v1415
      %v1421 = vsel %vm1417, 0.0, %v1414
      %v1422 = vsel %vm1418, 0.0, %v1413
      %v1423 = vsel %vm1419, 0.0, %v1412
      %v1424 = vld [vmem:[%s3] sm:$0x3]
      %v1425 = vsub.f32 %v1399, %v1420
      %v1426 = vsub.f32 %v1400, %v1421
      %v1427 = vsub.f32 %v1401, %v1422
      %v1428 = vsub.f32 %v1402, %v1423
      %v1433 = vcombine.low %v1425, %v1426
      %v1434 = vcombine.low %v1427, %v1428
      %v1436 = vunpack.c.l.s4 1983009808
      %v1437 = vunpack.c.0.s8 %v1436
      %v1438 = vlaneseq
      %v1439 = vshrl.u32 %v1438, 7
      %v1440 = vsub.s32 %v1437, %v1439
      %v1441 = vrot.slane %v1433, %v1440
      %v1443 = vunpack.c.l.s4 1983009808
      %v1444 = vunpack.c.0.s8 %v1443
      %v1445 = vlaneseq
      %v1446 = vshrl.u32 %v1445, 7
      %v1447 = vsub.s32 %v1444, %v1446
      %v1448 = vrot.slane %v1434, %v1447
      %v1449 = vcombine.low %v1441, %v1448
      %v1451 = vmul.f32 %v1025, %v1449
      %v1453 = vcombine.high %v1451, %v1451
      %v1455 = vunpack.c.l.s4 1983009808
      %v1456 = vunpack.c.0.s8 %v1455
      %v1457 = vlaneseq
      %v1458 = vshrl.u32 %v1457, 7
      %v1459 = vsub.s32 %v1456, %v1458
      %v1460 = vrot.slane %v1451, %v1459
      %v1462 = vunpack.c.l.s4 1983009808
      %v1463 = vunpack.c.0.s8 %v1462
      %v1464 = vlaneseq
      %v1465 = vshrl.u32 %v1464, 7
      %v1466 = vsub.s32 %v1463, %v1465
      %v1467 = vrot.slane %v1453, %v1466
      %v1468 = vcombine.high %v1460, %v1460
      %v1469 = vcombine.high %v1467, %v1467
      %vm1474 = vcmask 1041408
      %v1475 = vsel %vm1474, %v1460, 0.0
      %v1476 = vsel %vm1474, %v1468, 0.0
      %v1477 = vadd.f32 %v1475, %v1476
      %v1478 = vsel %vm1474, %v1467, 0.0
      %v1479 = vadd.f32 %v1477, %v1478
      %v1480 = vsel %vm1474, %v1469, 0.0
      %v1481 = vadd.f32 %v1479, %v1480
      %1482 = vadd.xlane.f32.xlu0 %v1481
      %v1483 = vpop.xlane.xlu0 %1482
      %v1484 = vld [vmem:[#allocation4] sm:$0x3]
      %v1485 = vmul.f32 %v1025, %v1484
      %v1486 = vsub.f32 %v1483, %v1485
      %v1487 = vadd.f32 %v1424, %v1486
      %vm1488 = vcmask 1024
      %1489 = vst.msk [vmem:[%s3] sm:$0x3] %vm1488, %v1487
      %v1490 = vld [vmem:[#allocation3] sm:$0x3]
      %v1491 = vunpack.c.l.bf16 %v1026
      %v1493 = vcombine.high %v1491, %v1491
      %v1495 = vunpack.c.l.s4 1983009808
      %v1496 = vunpack.c.0.s8 %v1495
      %v1497 = vlaneseq
      %v1498 = vshrl.u32 %v1497, 7
      %v1499 = vsub.s32 %v1496, %v1498
      %v1500 = vrot.slane %v1491, %v1499
      %v1502 = vunpack.c.l.s4 1983009808
      %v1503 = vunpack.c.0.s8 %v1502
      %v1504 = vlaneseq
      %v1505 = vshrl.u32 %v1504, 7
      %v1506 = vsub.s32 %v1503, %v1505
      %v1507 = vrot.slane %v1493, %v1506
      %v1508 = vcombine.high %v1500, %v1500
      %v1509 = vcombine.high %v1507, %v1507
      %v1514 = vsel %vm1474, %v1500, 0.0
      %v1515 = vsel %vm1474, %v1508, 0.0
      %v1516 = vadd.f32 %v1514, %v1515
      %v1517 = vsel %vm1474, %v1507, 0.0
      %v1518 = vadd.f32 %v1516, %v1517
      %v1519 = vsel %vm1474, %v1509, 0.0
      %v1520 = vadd.f32 %v1518, %v1519
      %1521 = vadd.xlane.f32.xlu0 %v1520
      %v1522 = vpop.xlane.xlu0 %1521
      %v1523 = vadd.f32 %v1490, %v1522
      %s1524 = sadd.s32 %s14, 1
      %s1525 = smul.u32 %s1524, 512
      %s1526 = scvt.s32.f32 %s1525
      %v1527 = vsub.f32 %v1027, %v1523
      %v1528 = vstv %s1526
      %v1529 = vsub.f32 %v1528, %v1523
      %v1530 = vadd.f32 %v1027, %v1529
      %v1531 = vrcp.pop %v1530
      %v1532 = vmul.f32 %v1527, %v1531
      %v1533 = vsub.f32 1.0, %v1532
      %1534 = vst.msk [vmem:[#allocation4] sm:$0x3] %vm1488, %v1533
      %1535 = vst.msk [vmem:[#allocation3] sm:$0x3] %vm1488, %v1523
      // Predicated region
      $region37: #{lovasz_loss.1} parent=31 // pred_check
        %p1536 = pneg %p100
      $region38: #{lovasz_loss.1} parent=31 // pred_check_branch
        %1538 = sbr.rel (%p1536) target = $region40
      $region39: #{lovasz_loss.1} parent=31 // pred_region
        _
      $region40: #{lovasz_loss.1} parent=31 // pred_fallthru
        _
      // Predicated region
      $region41: #{lovasz_loss.1} parent=31 // pred_check
        %p1539 = pneg %p100
      $region42: #{lovasz_loss.1} parent=31 // pred_check_branch
        %1541 = sbr.rel (%p1539) target = $region44
      $region43: #{lovasz_loss.1} parent=31 // pred_region
        _
      $region44: #{lovasz_loss.1} parent=31 // pred_fallthru
        _
    $region32: #{lovasz_loss.1} parent=5 // pred_fallthru
      _
    %p1542 = scmp.le.s32.totalorder 2, %s9
    // Predicated region
    $region45: #{lovasz_loss.1} parent=5 // pred_check
      %p1543 = pneg %p1542
    $region46: #{lovasz_loss.1} parent=5 // pred_check_branch
      %1545 = sbr.rel (%p1543) target = $region48
    $region47: #{lovasz_loss.1} parent=5 // pred_region
      %s1546 = ssub.s32 %s9, 2
    $region48: #{lovasz_loss.1} parent=5 // pred_fallthru
      _
  $region6: #{lovasz_loss.1} parent=0 // loop_footer
    %s13 = sadd.s32 1, %s9
  $region7: #{lovasz_loss.1} parent=0 // loop_footer_branch
    %8 = sbr.rel target = $region3
  $region8: #{lovasz_loss.1} parent=0 // loop_exit
    _

</llo_original>
